<compile_context>
chip_gen: v7x
topology: tpu7x:2x2x1
jax: 0.10.0
libtpu: 0.0.40
codegen_flags: <defaults>
</compile_context>

<pallas_src>
import numpy as np
import jax
import jax.numpy as jnp
from jax.experimental import pallas as pl
from jax.experimental.pallas import tpu as pltpu

BN_EPS = 1e-5
VMEM_LIMIT_BYTES = 32 * 1024 * 1024    # safe scoped-VMEM request on v5e/v6e/v7x
TILE_VMEM_BUDGET = 24 * 1024 * 1024    # target for double-buffered blocks + weights

ACTS = {
    "relu": lambda x: jnp.maximum(x, 0.0),
    "sigmoid": jax.nn.sigmoid,
    "tanh": jnp.tanh,
    "softmax": lambda x: jax.nn.softmax(x, axis=-1),
    "none": lambda x: x,
}


def _round_up(x, m):
    return ((x + m - 1) // m) * m


def _bn_pack(C):
    """How many activation rows fit in 128 lanes for the BN-apply kernel."""
    return 128 // C if (C < 128 and 128 % C == 0) else 1


def _choose_tiles(n_rows, granule, tm_max, row_bytes, fixed_bytes,
                  vmem_budget=TILE_VMEM_BUDGET):
    """Row tile + tile count.

    Big tiles amortize the ~0.35us/step pipeline overhead; an even tile count
    (>=2 when there is enough work) keeps both v7x TensorCores busy under
    dimension_semantics=("parallel",); tm is a multiple of `granule` so the
    lane-dense packed BN view always engages; tm is capped so double-buffered
    blocks + resident weights stay under the VMEM budget (v7x has 64 MiB)."""
    tm_max = max(_round_up(tm_max, granule), granule)
    n_g = _round_up(max(n_rows, 1), granule)
    if n_g <= granule:
        tm, n_tiles = granule, 1
    else:
        n_tiles = max(pl.cdiv(n_g, tm_max), 2)
        n_tiles += n_tiles % 2                      # even tile count for v7x megacore
        tm = _round_up(pl.cdiv(n_g, n_tiles), granule)
    while tm > granule and fixed_bytes + 2 * tm * row_bytes > vmem_budget:
        tm = _round_up(tm // 2, granule)
    if n_g > granule:
        n_tiles = max(pl.cdiv(n_g, tm), 2)
        n_tiles += n_tiles % 2
    return tm, n_tiles


# ---------------------------------------------------------------------------
# Pallas kernels
# ---------------------------------------------------------------------------
def _make_mlp_stats_kernel(n_layers, act_fn, n_valid, tm, matmul_dtype):
    """h = act(...act(x@W1+b1)...);  also emit per-tile (mean, M2) BN partials."""

    def kernel(*refs):
        x_ref = refs[0]
        o_ref = refs[1 + 2 * n_layers]
        stats_ref = refs[2 + 2 * n_layers]

        h = x_ref[...]
        for li in range(n_layers):
            w = refs[1 + 2 * li][...]              # resident, pre-cast to matmul_dtype
            b = refs[2 + 2 * li][...]              # (1, H) f32, broadcasts over rows
            h = jnp.dot(h.astype(matmul_dtype), w,
                        preferred_element_type=jnp.float32)
            h = act_fn(h + b)

        # TODO(synk): repack to (tm//(128//C), 128) before this store for an
        #             unmasked 128-lane vst (C=32 currently -> masked stores).
        o_ref[...] = h.astype(o_ref.dtype)

        # Per-tile BN partials over valid rows as (mean, M2): Chan-mergeable and
        # avoids the E[x^2] - E[x]^2 cancellation of a raw sum/sum-sq scheme.
        base = pl.program_id(0) * tm
        row = base + jax.lax.broadcasted_iota(jnp.int32, (tm, 1), 0)
        valid = row < n_valid
        cnt = jnp.minimum(jnp.maximum(n_valid - base, 1), tm).astype(jnp.float32)
        hv = jnp.where(valid, h, 0.0)
        mean = jnp.sum(hv, axis=0, keepdims=True) / cnt            # (1, C)
        dev = jnp.where(valid, h - mean, 0.0)
        m2 = jnp.sum(dev * dev, axis=0, keepdims=True)             # (1, C)
        stats_ref[:, 0:1, :] = mean[None]
        stats_ref[:, 1:2, :] = m2[None]

    return kernel


def _bn_apply_kernel(y_ref, scale_ref, shift_ref, o_ref):
    # Single fused multiply-add; scale/shift already fold mean/var/gamma/beta.
    o_ref[...] = (y_ref[...].astype(jnp.float32) * scale_ref[...]
                  + shift_ref[...]).astype(o_ref.dtype)


# ---------------------------------------------------------------------------
# Pallas runners
# ---------------------------------------------------------------------------
def _run_mlp_stats(flat, weights, biases, non_lin, tm, n_tiles, n_valid,
                   matmul_dtype, act_dtype):
    """flat: [Np, F] (Np = tm*n_tiles). Returns (act [Np,C], stats [n_tiles,2,C])."""
    Np, F = flat.shape
    n_layers = len(weights)
    C = weights[-1].shape[1]
    act_fn = ACTS[non_lin]

    in_specs = [pl.BlockSpec((tm, F), lambda i: (i, 0))]
    args = [flat]
    for w, b in zip(weights, biases):
        in_specs.append(pl.BlockSpec(w.shape, lambda i: (0, 0)))          # resident
        in_specs.append(pl.BlockSpec((1, b.shape[-1]), lambda i: (0, 0)))  # resident
        args.append(w)
        args.append(b)

    out_shapes = (jax.ShapeDtypeStruct((Np, C), act_dtype),
                  jax.ShapeDtypeStruct((n_tiles, 2, C), jnp.float32))
    out_specs = (pl.BlockSpec((tm, C), lambda i: (i, 0)),
                 pl.BlockSpec((1, 2, C), lambda i: (i, 0, 0)))

    return pl.pallas_call(
        _make_mlp_stats_kernel(n_layers, act_fn, n_valid, tm, matmul_dtype),
        out_shape=out_shapes,
        grid=(n_tiles,),
        in_specs=in_specs,
        out_specs=out_specs,
        compiler_params=pltpu.CompilerParams(
            dimension_semantics=("parallel",),
            vmem_limit_bytes=VMEM_LIMIT_BYTES),
    )(*args)


def _run_bn(y, scale, shift, tm, pack):
    """y: [Np, C]; applies y*scale + shift per channel on a lane-dense view."""
    Np, C = y.shape
    rows, tr, lanes = Np // pack, tm // pack, C * pack
    y2 = y.reshape(rows, lanes)                        # row-major: free relabel
    scale2 = jnp.tile(scale, pack).reshape(1, lanes)   # column j -> channel j % C
    shift2 = jnp.tile(shift, pack).reshape(1, lanes)

    vec_spec = pl.BlockSpec((1, lanes), lambda i: (0, 0))
    out = pl.pallas_call(
        _bn_apply_kernel,
        out_shape=jax.ShapeDtypeStruct((rows, lanes), jnp.float32),
        grid=(rows // tr,),
        in_specs=[pl.BlockSpec((tr, lanes), lambda i: (i, 0)), vec_spec, vec_spec],
        out_specs=pl.BlockSpec((tr, lanes), lambda i: (i, 0)),
        compiler_params=pltpu.CompilerParams(
            dimension_semantics=("parallel",),
            vmem_limit_bytes=VMEM_LIMIT_BYTES),
    )(y2, scale2, shift2)
    return out.reshape(Np, C)


# ---------------------------------------------------------------------------
# Forward wrapper (matches MovingDNNLayer.forward semantics, eval mode)
# ---------------------------------------------------------------------------
def moving_dnn_forward(x, params, *, num_frames, stride, non_lin="relu",
                       tm_max=4096, matmul_dtype=jnp.float32,
                       act_dtype=jnp.bfloat16):
    """x: [B, L, D] float32 -> [B, T, layer_dims[-1]] float32.

    act_dtype: storage dtype of the intermediate activation between the two
      kernels (bf16 halves the dominant HBM round trip; f32 = exact parity).
    matmul_dtype: MXU operand dtype (bf16 is fine on all generations; math,
      bias, activation and BN stats always stay f32)."""
    B, L, D = x.shape

    # ---- pad_sample ----
    remove_top = L - num_frames
    pad_len = -remove_top if remove_top < 0 else stride - remove_top % stride
    x_pad = jnp.concatenate([x, jnp.zeros((B, pad_len, D), x.dtype)], axis=1)
    Lp = L + pad_len

    # ---- parallel_stack: num_frames strided slices + one concat (O(nf) graph) ----
    T = 1 + (Lp - num_frames) // stride
    F = num_frames * D
    frames = [
        jax.lax.slice(x_pad, (0, f, 0), (B, f + (T - 1) * stride + 1, D),
                      (1, stride, 1))
        for f in range(num_frames)
    ]
    flat = jnp.concatenate(frames, axis=-1).reshape(B * T, F)   # [N, F]
    N = B * T

    weights = [w.astype(matmul_dtype) for w in params["weights"]]       # cast once
    biases = [b.astype(jnp.float32).reshape(1, -1) for b in params["biases"]]
    C = weights[-1].shape[1]

    # ---- tile selection: lane-dense granule, even tile count, VMEM budget ----
    pack = _bn_pack(C)
    granule = max(256, 8 * pack)
    row_bytes = F * flat.dtype.itemsize + C * jnp.dtype(act_dtype).itemsize
    fixed = 2 * (sum(int(w.size) * w.dtype.itemsize for w in weights)
                 + sum(int(b.size) * 4 for b in biases) + 2 * C * 4)
    tm, n_tiles = _choose_tiles(N, granule, tm_max, row_bytes, fixed)
    Np = tm * n_tiles
    if Np != N:
        flat = jnp.pad(flat, ((0, Np - N), (0, 0)))

    # ---- kernel 1: MLP + fused per-tile BN partials (one activation write) ----
    mlp_out, partial = _run_mlp_stats(flat, weights, biases, non_lin, tm,
                                      n_tiles, N, matmul_dtype, act_dtype)

    # ---- finalize batch stats: exact Chan merge of per-tile (mean, M2) ----
    counts = jnp.clip(N - jnp.arange(n_tiles) * tm, 0, tm).astype(jnp.float32)
    means, m2s = partial[:, 0, :], partial[:, 1, :]
    mean = jnp.sum(counts[:, None] * means, axis=0) / N
    m2 = jnp.sum(m2s, axis=0) + jnp.sum(counts[:, None] * (means - mean) ** 2, axis=0)
    var = m2 / N                                         # biased, like torch BN
    scale = params["bn_gamma"] * jax.lax.rsqrt(var + BN_EPS)
    shift = params["bn_beta"] - mean * scale

    # ---- kernel 2: BN apply as one lane-dense FMA pass ----
    bn_out = _run_bn(mlp_out, scale, shift, tm, pack)
    return bn_out[:N].reshape(B, T, C)


# ---------------------------------------------------------------------------
# Pure-JAX reference (for verification)
# ---------------------------------------------------------------------------
def reference_forward(x, params, *, num_frames, stride, non_lin="relu"):
    B, L, D = x.shape
    remove_top = L - num_frames
    pad_len = -remove_top if remove_top < 0 else stride - remove_top % stride
    x_pad = jnp.concatenate([x, jnp.zeros((B, pad_len, D), x.dtype)], axis=1)
    Lp = L + pad_len
    T = 1 + (Lp - num_frames) // stride
    F = num_frames * D
    h = jnp.stack(
        [x_pad[:, i * stride:i * stride + num_frames, :].reshape(B, F)
         for i in range(T)], axis=1)
    act = ACTS[non_lin]
    for w, b in zip(params["weights"], params["biases"]):
        h = act(h @ w + b)
    # transpose(1,2) -> BN1d over channels -> transpose back == normalize over (B,T)
    mean = jnp.mean(h, axis=(0, 1))
    var = jnp.mean((h - mean) ** 2, axis=(0, 1))
    h = (h - mean) * jax.lax.rsqrt(var + BN_EPS) * params["bn_gamma"] + params["bn_beta"]
    return h


# ---------------------------------------------------------------------------
def init_params(key, mfcc_dim, num_frames, layer_dims):
    dims = [mfcc_dim * num_frames] + list(layer_dims)
    weights, biases = [], []
    for i in range(len(layer_dims)):
        key, kw, kb = jax.random.split(key, 3)
        bound = 1.0 / np.sqrt(dims[i])
        # stored as [in, out] (transpose of PyTorch's [out, in]); y = x @ W + b
        weights.append(jax.random.uniform(kw, (dims[i], dims[i + 1]),
                                          jnp.float32, -bound, bound))
        biases.append(jax.random.uniform(kb, (dims[i + 1],),
                                         jnp.float32, -bound, bound))
    return {
        "weights": weights,
        "biases": biases,
        "bn_gamma": jnp.ones((layer_dims[-1],), jnp.float32),
        "bn_beta": jnp.zeros((layer_dims[-1],), jnp.float32),
    }


if __name__ == "__main__":
    # Module config: MovingDNNLayer(mfcc_dim=12, num_frames=3, stride=2,
    #                               layer_dims=[32, 32], 'relu', dropout=0.1)
    mfcc_dim, num_frames, stride = 12, 3, 2
    layer_dims = [32, 32]
    non_lin = "relu"
    B, L = 2, 16

    key = jax.random.PRNGKey(0)
    key, kx = jax.random.split(key)
    x = jax.random.normal(kx, (B, L, mfcc_dim), jnp.float32)
    params = init_params(key, mfcc_dim, num_frames, layer_dims)

    ref = jax.block_until_ready(
        reference_forward(x, params, num_frames=num_frames, stride=stride,
                          non_lin=non_lin))

    # Fast path: bf16 intermediate activation (all math in f32).
    out = jax.block_until_ready(
        moving_dnn_forward(x, params, num_frames=num_frames, stride=stride,
                           non_lin=non_lin))
    assert out.shape == (B, 8, layer_dims[-1]), out.shape
    np.testing.assert_allclose(np.asarray(out), np.asarray(ref),
                               atol=5e-2, rtol=5e-2)

    # Exact-parity path: f32 activation storage matches the reference tightly.
    out_f32 = jax.block_until_ready(
        moving_dnn_forward(x, params, num_frames=num_frames, stride=stride,
                           non_lin=non_lin, act_dtype=jnp.float32))
    np.testing.assert_allclose(np.asarray(out_f32), np.asarray(ref),
                               atol=2e-4, rtol=2e-4)

    print("KERNEL_OK")
</pallas_src>

<mosaic_0001>
module attributes {stable_mosaic.version = 11 : i64} {
  func.func @kernel(%arg0: i32, %arg1: memref<256x36xf32, #tpu.memory_space<vmem>>, %arg2: memref<36x32xf32, #tpu.memory_space<vmem>>, %arg3: memref<1x32xf32, #tpu.memory_space<vmem>>, %arg4: memref<32x32xf32, #tpu.memory_space<vmem>>, %arg5: memref<1x32xf32, #tpu.memory_space<vmem>>, %arg6: memref<256x32xbf16, #tpu.memory_space<vmem>>, %arg7: memref<1x2x32xf32, #tpu.memory_space<vmem>>) attributes {dimension_semantics = [#tpu.dimension_semantics<parallel>], iteration_bounds = array<i64: 1>, scalar_prefetch = 0 : i64, scratch_operands = 0 : i64, tpu.core_type = #tpu.core_type<tc>, window_params = [{transform_indices = @transform_0, window_bounds = array<i64: 256, 36>}, {pipeline_mode = #tpu.pipeline_mode<synchronous>, transform_indices = @transform_1, window_bounds = array<i64: 36, 32>}, {pipeline_mode = #tpu.pipeline_mode<synchronous>, transform_indices = @transform_2, window_bounds = array<i64: 1, 32>}, {pipeline_mode = #tpu.pipeline_mode<synchronous>, transform_indices = @transform_3, window_bounds = array<i64: 32, 32>}, {pipeline_mode = #tpu.pipeline_mode<synchronous>, transform_indices = @transform_4, window_bounds = array<i64: 1, 32>}, {transform_indices = @transform_5, window_bounds = array<i64: 256, 32>}, {transform_indices = @transform_6, window_bounds = array<i64: 1, 2, 32>}]} {
    %c0 = arith.constant 0 : index
    %c0_0 = arith.constant 0 : index
    %0 = vector.load %arg1[%c0, %c0_0] : memref<256x36xf32, #tpu.memory_space<vmem>>, vector<256x36xf32>
    %c0_1 = arith.constant 0 : index
    %c0_2 = arith.constant 0 : index
    %1 = vector.load %arg2[%c0_1, %c0_2] : memref<36x32xf32, #tpu.memory_space<vmem>>, vector<36x32xf32>
    %c0_3 = arith.constant 0 : index
    %c0_4 = arith.constant 0 : index
    %2 = vector.load %arg3[%c0_3, %c0_4] : memref<1x32xf32, #tpu.memory_space<vmem>>, vector<1x32xf32>
    %cst = arith.constant dense<0.000000e+00> : vector<256x32xf32>
    %3 = tpu.matmul %0, %1, %cst {dimension_numbers = #tpu.dot_dimension_numbers<[1], [0], [0], [1], [0, 0, 1, 1], [], []>} : vector<256x36xf32>, vector<36x32xf32>, vector<256x32xf32> -> vector<256x32xf32>
    %4 = vector.broadcast %2 : vector<1x32xf32> to vector<256x32xf32>
    %5 = arith.addf %3, %4 : vector<256x32xf32>
    %cst_5 = arith.constant 0.000000e+00 : f32
    %6 = vector.broadcast %cst_5 : f32 to vector<256x32xf32>
    %7 = arith.maximumf %5, %6 : vector<256x32xf32>
    %c0_6 = arith.constant 0 : index
    %c0_7 = arith.constant 0 : index
    %8 = vector.load %arg4[%c0_6, %c0_7] : memref<32x32xf32, #tpu.memory_space<vmem>>, vector<32x32xf32>
    %c0_8 = arith.constant 0 : index
    %c0_9 = arith.constant 0 : index
    %9 = vector.load %arg5[%c0_8, %c0_9] : memref<1x32xf32, #tpu.memory_space<vmem>>, vector<1x32xf32>
    %cst_10 = arith.constant dense<0.000000e+00> : vector<256x32xf32>
    %10 = tpu.matmul %7, %8, %cst_10 {dimension_numbers = #tpu.dot_dimension_numbers<[1], [0], [0], [1], [0, 0, 1, 1], [], []>} : vector<256x32xf32>, vector<32x32xf32>, vector<256x32xf32> -> vector<256x32xf32>
    %11 = vector.broadcast %9 : vector<1x32xf32> to vector<256x32xf32>
    %12 = arith.addf %10, %11 : vector<256x32xf32>
    %cst_11 = arith.constant 0.000000e+00 : f32
    %13 = vector.broadcast %cst_11 : f32 to vector<256x32xf32>
    %14 = arith.maximumf %12, %13 : vector<256x32xf32>
    %15 = arith.truncf %14 : vector<256x32xf32> to vector<256x32xbf16>
    %c0_12 = arith.constant 0 : index
    %c0_13 = arith.constant 0 : index
    %16 = vector.load %arg6[%c0_12, %c0_13] : memref<256x32xbf16, #tpu.memory_space<vmem>>, vector<256x32xbf16>
    tpu.vector_store %arg6[%c0_12, %c0_13], %15 {strides = array<i32>} : memref<256x32xbf16, #tpu.memory_space<vmem>>, vector<256x32xbf16>,
    %c256_i32 = arith.constant 256 : i32
    %17 = arith.muli %arg0, %c256_i32 : i32
    %18 = tpu.iota {dimensions = array<i32: 0>} : vector<256x1xi32>
    %19 = vector.broadcast %17 : i32 to vector<256x1xi32>
    %20 = arith.addi %19, %18 : vector<256x1xi32>
    %c16_i32 = arith.constant 16 : i32
    %21 = vector.broadcast %c16_i32 : i32 to vector<256x1xi32>
    %22 = arith.cmpi slt, %20, %21 : vector<256x1xi32>
    %c16_i32_14 = arith.constant 16 : i32
    %23 = arith.subi %c16_i32_14, %17 : i32
    %c1_i32 = arith.constant 1 : i32
    %24 = arith.maxsi %23, %c1_i32 : i32
    %c256_i32_15 = arith.constant 256 : i32
    %25 = arith.minsi %24, %c256_i32_15 : i32
    %26 = arith.sitofp %25 : i32 to f32
    %cst_16 = arith.constant 0.000000e+00 : f32
    %27 = vector.shape_cast %22 : vector<256x1xi1> to vector<256x1xi1>
    %28 = vector.broadcast %27 : vector<256x1xi1> to vector<256x32xi1>
    %29 = vector.broadcast %cst_16 : f32 to vector<256x32xf32>
    %30 = arith.select %28, %14, %29 : vector<256x32xi1>, vector<256x32xf32>
    %cst_17 = arith.constant dense<0.000000e+00> : vector<32xf32>
    %31 = vector.multi_reduction <add>, %30, %cst_17 [0] : vector<256x32xf32> to vector<32xf32>
    %32 = vector.shape_cast %31 : vector<32xf32> to vector<1x32xf32>
    %33 = vector.broadcast %26 : f32 to vector<1x32xf32>
    %34 = arith.divf %32, %33 : vector<1x32xf32>
    %35 = vector.broadcast %34 : vector<1x32xf32> to vector<256x32xf32>
    %36 = arith.subf %14, %35 : vector<256x32xf32>
    %cst_18 = arith.constant 0.000000e+00 : f32
    %37 = vector.shape_cast %22 : vector<256x1xi1> to vector<256x1xi1>
    %38 = vector.broadcast %37 : vector<256x1xi1> to vector<256x32xi1>
    %39 = vector.broadcast %cst_18 : f32 to vector<256x32xf32>
    %40 = arith.select %38, %36, %39 : vector<256x32xi1>, vector<256x32xf32>
    %41 = arith.mulf %40, %40 : vector<256x32xf32>
    %cst_19 = arith.constant dense<0.000000e+00> : vector<32xf32>
    %42 = vector.multi_reduction <add>, %41, %cst_19 [0] : vector<256x32xf32> to vector<32xf32>
    %43 = vector.shape_cast %42 : vector<32xf32> to vector<1x32xf32>
    %44 = vector.shape_cast %34 : vector<1x32xf32> to vector<1x1x32xf32>
    %c0_20 = arith.constant 0 : index
    %c0_21 = arith.constant 0 : index
    %c0_22 = arith.constant 0 : index
    %45 = vector.load %arg7[%c0_20, %c0_21, %c0_22] : memref<1x2x32xf32, #tpu.memory_space<vmem>>, vector<1x1x32xf32>
    tpu.vector_store %arg7[%c0_20, %c0_21, %c0_22], %44 {strides = array<i32>} : memref<1x2x32xf32, #tpu.memory_space<vmem>>, vector<1x1x32xf32>,
    %46 = vector.shape_cast %43 : vector<1x32xf32> to vector<1x1x32xf32>
    %c0_23 = arith.constant 0 : index
    %c1 = arith.constant 1 : index
    %c0_24 = arith.constant 0 : index
    %47 = vector.load %arg7[%c0_23, %c1, %c0_24] : memref<1x2x32xf32, #tpu.memory_space<vmem>>, vector<1x1x32xf32>
    tpu.vector_store %arg7[%c0_23, %c1, %c0_24], %46 {strides = array<i32>} : memref<1x2x32xf32, #tpu.memory_space<vmem>>, vector<1x1x32xf32>,
    return
  }
  func.func @transform_0(%arg0: i32) -> (i32, i32) {
    %c0_i32 = arith.constant 0 : i32
    %c0_i32_0 = arith.constant 0 : i32
    return %arg0, %c0_i32 : i32, i32
  }
  func.func @transform_1(%arg0: i32) -> (i32, i32) {
    %c0_i32 = arith.constant 0 : i32
    %c0_i32_0 = arith.constant 0 : i32
    %c0_i32_1 = arith.constant 0 : i32
    return %c0_i32, %c0_i32_0 : i32, i32
  }
  func.func @transform_2(%arg0: i32) -> (i32, i32) {
    %c0_i32 = arith.constant 0 : i32
    %c0_i32_0 = arith.constant 0 : i32
    %c0_i32_1 = arith.constant 0 : i32
    return %c0_i32, %c0_i32_0 : i32, i32
  }
  func.func @transform_3(%arg0: i32) -> (i32, i32) {
    %c0_i32 = arith.constant 0 : i32
    %c0_i32_0 = arith.constant 0 : i32
    %c0_i32_1 = arith.constant 0 : i32
    return %c0_i32, %c0_i32_0 : i32, i32
  }
  func.func @transform_4(%arg0: i32) -> (i32, i32) {
    %c0_i32 = arith.constant 0 : i32
    %c0_i32_0 = arith.constant 0 : i32
    %c0_i32_1 = arith.constant 0 : i32
    return %c0_i32, %c0_i32_0 : i32, i32
  }
  func.func @transform_5(%arg0: i32) -> (i32, i32) {
    %c0_i32 = arith.constant 0 : i32
    %c0_i32_0 = arith.constant 0 : i32
    return %arg0, %c0_i32 : i32, i32
  }
  func.func @transform_6(%arg0: i32) -> (i32, i32, i32) {
    %c0_i32 = arith.constant 0 : i32
    %c0_i32_0 = arith.constant 0 : i32
    %c0_i32_1 = arith.constant 0 : i32
    return %arg0, %c0_i32, %c0_i32_0 : i32, i32, i32
  }
}

</mosaic_0001>

<llo_original>
// kernel: tpu_custom_call.1
$region0: #{tpu_custom_call.1}
  #allocation0 [shape = 'u32[]', space=smem, size = 0x4, offset = 0x4, fixed_abs, tag = 'smem constant byte address 0x4 - core index']
  #allocation1 [shape = 'u32[144,128]{1,0:T(1,128)}', space=vmem, size = 0x12000, scoped, tag = 'internal scratch']
  %s0 = inlined_call_operand.vmem [shape: f32[256,36], index: 0, kind: input, shape index: {}]
  %s1 = inlined_call_operand.vmem [shape: f32[36,32], index: 1, kind: input, shape index: {}]
  %s2 = inlined_call_operand.vmem [shape: f32[1,32], index: 2, kind: input, shape index: {}]
  %s3 = inlined_call_operand.vmem [shape: f32[32,32], index: 3, kind: input, shape index: {}]
  %s4 = inlined_call_operand.vmem [shape: f32[1,32], index: 4, kind: input, shape index: {}]
  %s5 = inlined_call_operand.vmem [shape: bf16[256,32], index: 5, kind: output, shape index: {0}]
  %s6 = inlined_call_operand.hbm [shape: f32[1,2,32], index: 6, kind: output, shape index: {1}]
  %7 = xla_tuple %s5, %s6
  %s8 = sld [smem:[#allocation0]]
  $region38: #{tpu_custom_call.1} parent=0
    _
  %s10 = ssub.s32 1, %s8
  %s11 = scalar_select 0, %s10, %s8
  $region1: #{tpu_custom_call.1} parent=0
    #allocation2 [shape = 'u8[1024]{0}', space=vmem, size = 0x400, scoped, tag = 'output window, operand 1, single buffered']
    #allocation3 [shape = 's32[1]{0}', space=sflag, size = 0x4, scoped, tag = 'scoped memory for tpu_custom_call.1']
    %12 = vsyncpa [#allocation3], 0
    // Predicated region
    $region2: #{tpu_custom_call.1} parent=1 // pred_check
      _
    $region3: #{tpu_custom_call.1} parent=1 // pred_check_branch
      %14 = sbr.rel (0) target = $region5
    $region4: #{tpu_custom_call.1} parent=1 // pred_region
      _
    $region5: #{tpu_custom_call.1} parent=1 // pred_fallthru
      _
    // Predicated region
    $region6: #{tpu_custom_call.1} parent=1 // pred_check
      _
    $region7: #{tpu_custom_call.1} parent=1 // pred_check_branch
      %16 = sbr.rel (0) target = $region9
    $region8: #{tpu_custom_call.1} parent=1 // pred_region
      _
    $region9: #{tpu_custom_call.1} parent=1 // pred_fallthru
      _
    // Predicated region
    $region10: #{tpu_custom_call.1} parent=1 // pred_check
      _
    $region11: #{tpu_custom_call.1} parent=1 // pred_check_branch
      %18 = sbr.rel (0) target = $region13
    $region12: #{tpu_custom_call.1} parent=1 // pred_region
      _
    $region13: #{tpu_custom_call.1} parent=1 // pred_fallthru
      _
    // Predicated region
    $region14: #{tpu_custom_call.1} parent=1 // pred_check
      _
    $region15: #{tpu_custom_call.1} parent=1 // pred_check_branch
      %20 = sbr.rel (0) target = $region17
    $region16: #{tpu_custom_call.1} parent=1 // pred_region
      _
    $region17: #{tpu_custom_call.1} parent=1 // pred_fallthru
      _
    // Predicated region
    $region18: #{tpu_custom_call.1} parent=1 // pred_check
      _
    $region19: #{tpu_custom_call.1} parent=1 // pred_check_branch
      %22 = sbr.rel (0) target = $region21
    $region20: #{tpu_custom_call.1} parent=1 // pred_region
      _
    $region21: #{tpu_custom_call.1} parent=1 // pred_fallthru
      _
    %v23 = vld [vmem:[%s0] sm:$0xff]
    %v24 = vld [vmem:[%s0 + $0x8] sm:$0xff]
    %v25 = vld [vmem:[%s0 + $0x10] sm:$0xff]
    %v26 = vld [vmem:[%s0 + $0x18] sm:$0xff]
    %v27 = vld [vmem:[%s0 + $0x20] sm:$0xff]
    %v28 = vld [vmem:[%s0 + $0x28] sm:$0xff]
    %v29 = vld [vmem:[%s0 + $0x30] sm:$0xff]
    %v30 = vld [vmem:[%s0 + $0x38] sm:$0xff]
    %v31 = vld [vmem:[%s0 + $0x40] sm:$0xff]
    %v32 = vld [vmem:[%s0 + $0x48] sm:$0xff]
    %v33 = vld [vmem:[%s0 + $0x50] sm:$0xff]
    %v34 = vld [vmem:[%s0 + $0x58] sm:$0xff]
    %v35 = vld [vmem:[%s0 + $0x60] sm:$0xff]
    %v36 = vld [vmem:[%s0 + $0x68] sm:$0xff]
    %v37 = vld [vmem:[%s0 + $0x70] sm:$0xff]
    %v38 = vld [vmem:[%s0 + $0x78] sm:$0xff]
    %v39 = vld [vmem:[%s0 + $0x80] sm:$0xff]
    %v40 = vld [vmem:[%s0 + $0x88] sm:$0xff]
    %v41 = vld [vmem:[%s0 + $0x90] sm:$0xff]
    %v42 = vld [vmem:[%s0 + $0x98] sm:$0xff]
    %v43 = vld [vmem:[%s0 + $0xa0] sm:$0xff]
    %v44 = vld [vmem:[%s0 + $0xa8] sm:$0xff]
    %v45 = vld [vmem:[%s0 + $0xb0] sm:$0xff]
    %v46 = vld [vmem:[%s0 + $0xb8] sm:$0xff]
    %v47 = vld [vmem:[%s0 + $0xc0] sm:$0xff]
    %v48 = vld [vmem:[%s0 + $0xc8] sm:$0xff]
    %v49 = vld [vmem:[%s0 + $0xd0] sm:$0xff]
    %v50 = vld [vmem:[%s0 + $0xd8] sm:$0xff]
    %v51 = vld [vmem:[%s0 + $0xe0] sm:$0xff]
    %v52 = vld [vmem:[%s0 + $0xe8] sm:$0xff]
    %v53 = vld [vmem:[%s0 + $0xf0] sm:$0xff]
    %v54 = vld [vmem:[%s0 + $0xf8] sm:$0xff]
    %v55 = vld [vmem:[%s1] sm:$0xff]
    %v56 = vld [vmem:[%s1 + $0x8] sm:$0xff]
    %v57 = vld [vmem:[%s1 + $0x10] sm:$0xff]
    %v58 = vld [vmem:[%s1 + $0x18] sm:$0xff]
    %v59 = vld [vmem:[%s1 + $0x20] sm:$0xf]
    %v60 = vld [vmem:[%s2] sm:$0x1]
    %v62 = vlaneseq
    %v63 = vshrl.u32 %v62, 7
    %v64 = vsub.s32 0, %v63
    %v65 = vrot.slane %v60, %v64
    %vm67 = vcmask 293888
    %v69 = vsel %vm67, %v23, 0
    %v72 = vsel %vm67, %v24, 0
    %v75 = vsel %vm67, %v25, 0
    %v78 = vsel %vm67, %v26, 0
    %v81 = vsel %vm67, %v27, 0
    %v84 = vsel %vm67, %v28, 0
    %v87 = vsel %vm67, %v29, 0
    %v90 = vsel %vm67, %v30, 0
    %v93 = vsel %vm67, %v31, 0
    %v96 = vsel %vm67, %v32, 0
    %v99 = vsel %vm67, %v33, 0
    %v102 = vsel %vm67, %v34, 0
    %v105 = vsel %vm67, %v35, 0
    %v108 = vsel %vm67, %v36, 0
    %v111 = vsel %vm67, %v37, 0
    %v114 = vsel %vm67, %v38, 0
    %v117 = vsel %vm67, %v39, 0
    %v120 = vsel %vm67, %v40, 0
    %v123 = vsel %vm67, %v41, 0
    %v126 = vsel %vm67, %v42, 0
    %v129 = vsel %vm67, %v43, 0
    %v132 = vsel %vm67, %v44, 0
    %v135 = vsel %vm67, %v45, 0
    %v138 = vsel %vm67, %v46, 0
    %v141 = vsel %vm67, %v47, 0
    %v144 = vsel %vm67, %v48, 0
    %v147 = vsel %vm67, %v49, 0
    %v150 = vsel %vm67, %v50, 0
    %v153 = vsel %vm67, %v51, 0
    %v156 = vsel %vm67, %v52, 0
    %v159 = vsel %vm67, %v53, 0
    %v162 = vsel %vm67, %v54, 0
    %vm164 = vcmask 1043456
    %v166 = vsel %vm164, %v59, 0
    %168 = vmatprep.subr.mxu0 0.0
    %169 = vmatpush1.msra.mxu0 %v55
    %170 = vmatprep.subr.mxu0 0.0
    %171 = vmatpush1.msra.mxu0 %v56
    %172 = vmatprep.subr.mxu0 0.0
    %173 = vmatpush1.msra.mxu0 %v57
    %174 = vmatprep.subr.mxu0 0.0
    %175 = vmatpush1.msra.mxu0 %v58
    %176 = vmatprep.subr.mxu0 0.0
    %177 = vmatpush1.msra.mxu0 %v166
    %178 = vmatprep.subr.mxu0 0.0
    %179 = vmatpush1.msra.mxu0 0.0
    %180 = vmatprep.subr.mxu0 0.0
    %181 = vmatpush1.msra.mxu0 0.0
    %182 = vmatprep.subr.mxu0 0.0
    %183 = vmatpush1.msra.mxu0 0.0
    %184 = vmatprep.subr.mxu0 0.0
    %185 = vmatpush1.msra.mxu0 0.0
    %186 = vmatprep.subr.mxu0 0.0
    %187 = vmatpush1.msra.mxu0 0.0
    %188 = vmatprep.subr.mxu0 0.0
    %189 = vmatpush1.msra.mxu0 0.0
    %190 = vmatprep.subr.mxu0 0.0
    %191 = vmatpush1.msra.mxu0 0.0
    %192 = vmatprep.subr.mxu0 0.0
    %193 = vmatpush1.msra.mxu0 0.0
    %194 = vmatprep.subr.mxu0 0.0
    %195 = vmatpush1.msra.mxu0 0.0
    %196 = vmatprep.subr.mxu0 0.0
    %197 = vmatpush1.msra.mxu0 0.0
    %198 = vmatprep.subr.mxu0 0.0
    %199 = vmatpush1.msra.mxu0 0.0
    %200 = vmatprep.subr.mxu0 0.0
    %201 = vmatpush1.msra.mxu0 0.0
    %202 = vmatprep.subr.mxu0 0.0
    %203 = vmatpush1.msra.mxu0 0.0
    %204 = vmatprep.subr.mxu0 0.0
    %205 = vmatpush1.msra.mxu0 0.0
    %206 = vmatprep.subr.mxu0 0.0
    %207 = vmatpush1.msra.mxu0 0.0
    %208 = vmatprep.subr.mxu0 0.0
    %209 = vmatpush1.msra.mxu0 0.0
    %210 = vmatprep.subr.mxu0 0.0
    %211 = vmatpush1.msra.mxu0 0.0
    %212 = vmatprep.subr.mxu0 0.0
    %213 = vmatpush1.msra.mxu0 0.0
    %214 = vmatprep.subr.mxu0 0.0
    %215 = vmatpush1.msra.mxu0 0.0
    %216 = vmatprep.subr.mxu0 0.0
    %217 = vmatpush1.msra.mxu0 0.0
    %218 = vmatprep.subr.mxu0 0.0
    %219 = vmatpush1.msra.mxu0 0.0
    %220 = vmatprep.subr.mxu0 0.0
    %221 = vmatpush1.msra.mxu0 0.0
    %222 = vmatprep.subr.mxu0 0.0
    %223 = vmatpush1.msra.mxu0 0.0
    %224 = vmatprep.subr.mxu0 0.0
    %225 = vmatpush1.msra.mxu0 0.0
    %226 = vmatprep.subr.mxu0 0.0
    %227 = vmatpush1.msra.mxu0 0.0
    %228 = vmatprep.subr.mxu0 0.0
    %229 = vmatpush1.msra.mxu0 0.0
    %230 = vmatprep.subr.mxu0 0.0
    %231 = vmatpush1.msra.mxu0 0.0
    %232 = vmatprep.mubr.f32.mxu0 0.0
    %233 = vmatmul.mubr.f32.gmra.mrb[0].mxu0 %v69
    %v234 = vpop.f32.mrb[0].mxu0
    %v235 = vadd.f32 %v65, %v234
    %v236 = vpop.f32.mrb[0].mxu0
    %237 = vmatprep.mubr.f32.mxu0 0.0
    %238 = vmatmul.mubr.f32.gmra.mrb[0].mxu0 %v72
    %v239 = vpop.f32.mrb[0].mxu0
    %v240 = vadd.f32 %v65, %v239
    %v241 = vpop.f32.mrb[0].mxu0
    %242 = vmatprep.mubr.f32.mxu0 0.0
    %243 = vmatmul.mubr.f32.gmra.mrb[0].mxu0 %v75
    %v244 = vpop.f32.mrb[0].mxu0
    %v245 = vadd.f32 %v65, %v244
    %v246 = vpop.f32.mrb[0].mxu0
    %247 = vmatprep.mubr.f32.mxu0 0.0
    %248 = vmatmul.mubr.f32.gmra.mrb[0].mxu0 %v78
    %v249 = vpop.f32.mrb[0].mxu0
    %v250 = vadd.f32 %v65, %v249
    %v251 = vpop.f32.mrb[0].mxu0
    %252 = vmatprep.mubr.f32.mxu0 0.0
    %253 = vmatmul.mubr.f32.gmra.mrb[0].mxu0 %v81
    %v254 = vpop.f32.mrb[0].mxu0
    %v255 = vadd.f32 %v65, %v254
    %v256 = vpop.f32.mrb[0].mxu0
    %257 = vmatprep.mubr.f32.mxu0 0.0
    %258 = vmatmul.mubr.f32.gmra.mrb[0].mxu0 %v84
    %v259 = vpop.f32.mrb[0].mxu0
    %v260 = vadd.f32 %v65, %v259
    %v261 = vpop.f32.mrb[0].mxu0
    %262 = vmatprep.mubr.f32.mxu0 0.0
    %263 = vmatmul.mubr.f32.gmra.mrb[0].mxu0 %v87
    %v264 = vpop.f32.mrb[0].mxu0
    %v265 = vadd.f32 %v65, %v264
    %v266 = vpop.f32.mrb[0].mxu0
    %267 = vmatprep.mubr.f32.mxu0 0.0
    %268 = vmatmul.mubr.f32.gmra.mrb[0].mxu0 %v90
    %v269 = vpop.f32.mrb[0].mxu0
    %v270 = vadd.f32 %v65, %v269
    %v271 = vpop.f32.mrb[0].mxu0
    %272 = vmatprep.mubr.f32.mxu0 0.0
    %273 = vmatmul.mubr.f32.gmra.mrb[0].mxu0 %v93
    %v274 = vpop.f32.mrb[0].mxu0
    %v275 = vadd.f32 %v65, %v274
    %v276 = vpop.f32.mrb[0].mxu0
    %277 = vmatprep.mubr.f32.mxu0 0.0
    %278 = vmatmul.mubr.f32.gmra.mrb[0].mxu0 %v96
    %v279 = vpop.f32.mrb[0].mxu0
    %v280 = vadd.f32 %v65, %v279
    %v281 = vpop.f32.mrb[0].mxu0
    %282 = vmatprep.mubr.f32.mxu0 0.0
    %283 = vmatmul.mubr.f32.gmra.mrb[0].mxu0 %v99
    %v284 = vpop.f32.mrb[0].mxu0
    %v285 = vadd.f32 %v65, %v284
    %v286 = vpop.f32.mrb[0].mxu0
    %287 = vmatprep.mubr.f32.mxu0 0.0
    %288 = vmatmul.mubr.f32.gmra.mrb[0].mxu0 %v102
    %v289 = vpop.f32.mrb[0].mxu0
    %v290 = vadd.f32 %v65, %v289
    %v291 = vpop.f32.mrb[0].mxu0
    %292 = vmatprep.mubr.f32.mxu0 0.0
    %293 = vmatmul.mubr.f32.gmra.mrb[0].mxu0 %v105
    %v294 = vpop.f32.mrb[0].mxu0
    %v295 = vadd.f32 %v65, %v294
    %v296 = vpop.f32.mrb[0].mxu0
    %297 = vmatprep.mubr.f32.mxu0 0.0
    %298 = vmatmul.mubr.f32.gmra.mrb[0].mxu0 %v108
    %v299 = vpop.f32.mrb[0].mxu0
    %v300 = vadd.f32 %v65, %v299
    %v301 = vpop.f32.mrb[0].mxu0
    %302 = vmatprep.mubr.f32.mxu0 0.0
    %303 = vmatmul.mubr.f32.gmra.mrb[0].mxu0 %v111
    %v304 = vpop.f32.mrb[0].mxu0
    %v305 = vadd.f32 %v65, %v304
    %v306 = vpop.f32.mrb[0].mxu0
    %307 = vmatprep.mubr.f32.mxu0 0.0
    %308 = vmatmul.mubr.f32.gmra.mrb[0].mxu0 %v114
    %v309 = vpop.f32.mrb[0].mxu0
    %v310 = vadd.f32 %v65, %v309
    %v311 = vpop.f32.mrb[0].mxu0
    %312 = vmatprep.mubr.f32.mxu0 0.0
    %313 = vmatmul.mubr.f32.gmra.mrb[0].mxu0 %v117
    %v314 = vpop.f32.mrb[0].mxu0
    %v315 = vadd.f32 %v65, %v314
    %v316 = vpop.f32.mrb[0].mxu0
    %317 = vmatprep.mubr.f32.mxu0 0.0
    %318 = vmatmul.mubr.f32.gmra.mrb[0].mxu0 %v120
    %v319 = vpop.f32.mrb[0].mxu0
    %v320 = vadd.f32 %v65, %v319
    %v321 = vpop.f32.mrb[0].mxu0
    %322 = vmatprep.mubr.f32.mxu0 0.0
    %323 = vmatmul.mubr.f32.gmra.mrb[0].mxu0 %v123
    %v324 = vpop.f32.mrb[0].mxu0
    %v325 = vadd.f32 %v65, %v324
    %v326 = vpop.f32.mrb[0].mxu0
    %327 = vmatprep.mubr.f32.mxu0 0.0
    %328 = vmatmul.mubr.f32.gmra.mrb[0].mxu0 %v126
    %v329 = vpop.f32.mrb[0].mxu0
    %v330 = vadd.f32 %v65, %v329
    %v331 = vpop.f32.mrb[0].mxu0
    %332 = vmatprep.mubr.f32.mxu0 0.0
    %333 = vmatmul.mubr.f32.gmra.mrb[0].mxu0 %v129
    %v334 = vpop.f32.mrb[0].mxu0
    %v335 = vadd.f32 %v65, %v334
    %v336 = vpop.f32.mrb[0].mxu0
    %337 = vmatprep.mubr.f32.mxu0 0.0
    %338 = vmatmul.mubr.f32.gmra.mrb[0].mxu0 %v132
    %v339 = vpop.f32.mrb[0].mxu0
    %v340 = vadd.f32 %v65, %v339
    %v341 = vpop.f32.mrb[0].mxu0
    %342 = vmatprep.mubr.f32.mxu0 0.0
    %343 = vmatmul.mubr.f32.gmra.mrb[0].mxu0 %v135
    %v344 = vpop.f32.mrb[0].mxu0
    %v345 = vadd.f32 %v65, %v344
    %v346 = vpop.f32.mrb[0].mxu0
    %347 = vmatprep.mubr.f32.mxu0 0.0
    %348 = vmatmul.mubr.f32.gmra.mrb[0].mxu0 %v138
    %v349 = vpop.f32.mrb[0].mxu0
    %v350 = vadd.f32 %v65, %v349
    %v351 = vpop.f32.mrb[0].mxu0
    %352 = vmatprep.mubr.f32.mxu0 0.0
    %353 = vmatmul.mubr.f32.gmra.mrb[0].mxu0 %v141
    %v354 = vpop.f32.mrb[0].mxu0
    %v355 = vadd.f32 %v65, %v354
    %v356 = vpop.f32.mrb[0].mxu0
    %357 = vmatprep.mubr.f32.mxu0 0.0
    %358 = vmatmul.mubr.f32.gmra.mrb[0].mxu0 %v144
    %v359 = vpop.f32.mrb[0].mxu0
    %v360 = vadd.f32 %v65, %v359
    %v361 = vpop.f32.mrb[0].mxu0
    %362 = vmatprep.mubr.f32.mxu0 0.0
    %363 = vmatmul.mubr.f32.gmra.mrb[0].mxu0 %v147
    %v364 = vpop.f32.mrb[0].mxu0
    %v365 = vadd.f32 %v65, %v364
    %v366 = vpop.f32.mrb[0].mxu0
    %367 = vmatprep.mubr.f32.mxu0 0.0
    %368 = vmatmul.mubr.f32.gmra.mrb[0].mxu0 %v150
    %v369 = vpop.f32.mrb[0].mxu0
    %v370 = vadd.f32 %v65, %v369
    %v371 = vpop.f32.mrb[0].mxu0
    %372 = vmatprep.mubr.f32.mxu0 0.0
    %373 = vmatmul.mubr.f32.gmra.mrb[0].mxu0 %v153
    %v374 = vpop.f32.mrb[0].mxu0
    %v375 = vadd.f32 %v65, %v374
    %v376 = vpop.f32.mrb[0].mxu0
    %377 = vmatprep.mubr.f32.mxu0 0.0
    %378 = vmatmul.mubr.f32.gmra.mrb[0].mxu0 %v156
    %v379 = vpop.f32.mrb[0].mxu0
    %v380 = vadd.f32 %v65, %v379
    %v381 = vpop.f32.mrb[0].mxu0
    %382 = vmatprep.mubr.f32.mxu0 0.0
    %383 = vmatmul.mubr.f32.gmra.mrb[0].mxu0 %v159
    %v384 = vpop.f32.mrb[0].mxu0
    %v385 = vadd.f32 %v65, %v384
    %v386 = vpop.f32.mrb[0].mxu0
    %387 = vmatprep.mubr.f32.mxu0 0.0
    %388 = vmatmul.mubr.f32.gmra.mrb[0].mxu0 %v162
    %v389 = vpop.f32.mrb[0].mxu0
    %v390 = vadd.f32 %v65, %v389
    %v391 = vpop.f32.mrb[0].mxu0
    %392 = vdwg.mxu0
    %v393 = vmax.f32 %v235, 0.0
    %v394 = vmax.f32 %v240, 0.0
    %v395 = vmax.f32 %v245, 0.0
    %v396 = vmax.f32 %v250, 0.0
    %v397 = vmax.f32 %v255, 0.0
    %v398 = vmax.f32 %v260, 0.0
    %v399 = vmax.f32 %v265, 0.0
    %v400 = vmax.f32 %v270, 0.0
    %v401 = vmax.f32 %v275, 0.0
    %v402 = vmax.f32 %v280, 0.0
    %v403 = vmax.f32 %v285, 0.0
    %v404 = vmax.f32 %v290, 0.0
    %v405 = vmax.f32 %v295, 0.0
    %v406 = vmax.f32 %v300, 0.0
    %v407 = vmax.f32 %v305, 0.0
    %v408 = vmax.f32 %v310, 0.0
    %v409 = vmax.f32 %v315, 0.0
    %v410 = vmax.f32 %v320, 0.0
    %v411 = vmax.f32 %v325, 0.0
    %v412 = vmax.f32 %v330, 0.0
    %v413 = vmax.f32 %v335, 0.0
    %v414 = vmax.f32 %v340, 0.0
    %v415 = vmax.f32 %v345, 0.0
    %v416 = vmax.f32 %v350, 0.0
    %v417 = vmax.f32 %v355, 0.0
    %v418 = vmax.f32 %v360, 0.0
    %v419 = vmax.f32 %v365, 0.0
    %v420 = vmax.f32 %v370, 0.0
    %v421 = vmax.f32 %v375, 0.0
    %v422 = vmax.f32 %v380, 0.0
    %v423 = vmax.f32 %v385, 0.0
    %v424 = vmax.f32 %v390, 0.0
    %v425 = vld [vmem:[%s3] sm:$0xff]
    %v426 = vld [vmem:[%s3 + $0x8] sm:$0xff]
    %v427 = vld [vmem:[%s3 + $0x10] sm:$0xff]
    %v428 = vld [vmem:[%s3 + $0x18] sm:$0xff]
    %v429 = vld [vmem:[%s4] sm:$0x1]
    %v431 = vlaneseq
    %v432 = vshrl.u32 %v431, 7
    %v433 = vsub.s32 0, %v432
    %v434 = vrot.slane %v429, %v433
    %vm436 = vcmask 261120
    %v438 = vsel %vm436, %v393, 0
    %v441 = vsel %vm436, %v394, 0
    %v444 = vsel %vm436, %v395, 0
    %v447 = vsel %vm436, %v396, 0
    %v450 = vsel %vm436, %v397, 0
    %v453 = vsel %vm436, %v398, 0
    %v456 = vsel %vm436, %v399, 0
    %v459 = vsel %vm436, %v400, 0
    %v462 = vsel %vm436, %v401, 0
    %v465 = vsel %vm436, %v402, 0
    %v468 = vsel %vm436, %v403, 0
    %v471 = vsel %vm436, %v404, 0
    %v474 = vsel %vm436, %v405, 0
    %v477 = vsel %vm436, %v406, 0
    %v480 = vsel %vm436, %v407, 0
    %v483 = vsel %vm436, %v408, 0
    %v486 = vsel %vm436, %v409, 0
    %v489 = vsel %vm436, %v410, 0
    %v492 = vsel %vm436, %v411, 0
    %v495 = vsel %vm436, %v412, 0
    %v498 = vsel %vm436, %v413, 0
    %v501 = vsel %vm436, %v414, 0
    %v504 = vsel %vm436, %v415, 0
    %v507 = vsel %vm436, %v416, 0
    %v510 = vsel %vm436, %v417, 0
    %v513 = vsel %vm436, %v418, 0
    %v516 = vsel %vm436, %v419, 0
    %v519 = vsel %vm436, %v420, 0
    %v522 = vsel %vm436, %v421, 0
    %v525 = vsel %vm436, %v422, 0
    %v528 = vsel %vm436, %v423, 0
    %v531 = vsel %vm436, %v424, 0
    %533 = vmatprep.subr.mxu0 0.0
    %534 = vmatpush1.msra.mxu0 %v425
    %535 = vmatprep.subr.mxu0 0.0
    %536 = vmatpush1.msra.mxu0 %v426
    %537 = vmatprep.subr.mxu0 0.0
    %538 = vmatpush1.msra.mxu0 %v427
    %539 = vmatprep.subr.mxu0 0.0
    %540 = vmatpush1.msra.mxu0 %v428
    %541 = vmatprep.subr.mxu0 0.0
    %542 = vmatpush1.msra.mxu0 0.0
    %543 = vmatprep.subr.mxu0 0.0
    %544 = vmatpush1.msra.mxu0 0.0
    %545 = vmatprep.subr.mxu0 0.0
    %546 = vmatpush1.msra.mxu0 0.0
    %547 = vmatprep.subr.mxu0 0.0
    %548 = vmatpush1.msra.mxu0 0.0
    %549 = vmatprep.subr.mxu0 0.0
    %550 = vmatpush1.msra.mxu0 0.0
    %551 = vmatprep.subr.mxu0 0.0
    %552 = vmatpush1.msra.mxu0 0.0
    %553 = vmatprep.subr.mxu0 0.0
    %554 = vmatpush1.msra.mxu0 0.0
    %555 = vmatprep.subr.mxu0 0.0
    %556 = vmatpush1.msra.mxu0 0.0
    %557 = vmatprep.subr.mxu0 0.0
    %558 = vmatpush1.msra.mxu0 0.0
    %559 = vmatprep.subr.mxu0 0.0
    %560 = vmatpush1.msra.mxu0 0.0
    %561 = vmatprep.subr.mxu0 0.0
    %562 = vmatpush1.msra.mxu0 0.0
    %563 = vmatprep.subr.mxu0 0.0
    %564 = vmatpush1.msra.mxu0 0.0
    %565 = vmatprep.subr.mxu0 0.0
    %566 = vmatpush1.msra.mxu0 0.0
    %567 = vmatprep.subr.mxu0 0.0
    %568 = vmatpush1.msra.mxu0 0.0
    %569 = vmatprep.subr.mxu0 0.0
    %570 = vmatpush1.msra.mxu0 0.0
    %571 = vmatprep.subr.mxu0 0.0
    %572 = vmatpush1.msra.mxu0 0.0
    %573 = vmatprep.subr.mxu0 0.0
    %574 = vmatpush1.msra.mxu0 0.0
    %575 = vmatprep.subr.mxu0 0.0
    %576 = vmatpush1.msra.mxu0 0.0
    %577 = vmatprep.subr.mxu0 0.0
    %578 = vmatpush1.msra.mxu0 0.0
    %579 = vmatprep.subr.mxu0 0.0
    %580 = vmatpush1.msra.mxu0 0.0
    %581 = vmatprep.subr.mxu0 0.0
    %582 = vmatpush1.msra.mxu0 0.0
    %583 = vmatprep.subr.mxu0 0.0
    %584 = vmatpush1.msra.mxu0 0.0
    %585 = vmatprep.subr.mxu0 0.0
    %586 = vmatpush1.msra.mxu0 0.0
    %587 = vmatprep.subr.mxu0 0.0
    %588 = vmatpush1.msra.mxu0 0.0
    %589 = vmatprep.subr.mxu0 0.0
    %590 = vmatpush1.msra.mxu0 0.0
    %591 = vmatprep.subr.mxu0 0.0
    %592 = vmatpush1.msra.mxu0 0.0
    %593 = vmatprep.subr.mxu0 0.0
    %594 = vmatpush1.msra.mxu0 0.0
    %595 = vmatprep.subr.mxu0 0.0
    %596 = vmatpush1.msra.mxu0 0.0
    %597 = vmatprep.mubr.f32.mxu0 0.0
    %598 = vmatmul.mubr.f32.gmra.mrb[0].mxu0 %v438
    %v599 = vpop.f32.mrb[0].mxu0
    %v600 = vadd.f32 %v434, %v599
    %v601 = vpop.f32.mrb[0].mxu0
    %602 = vmatprep.mubr.f32.mxu0 0.0
    %603 = vmatmul.mubr.f32.gmra.mrb[0].mxu0 %v441
    %v604 = vpop.f32.mrb[0].mxu0
    %v605 = vadd.f32 %v434, %v604
    %v606 = vpop.f32.mrb[0].mxu0
    %607 = vmatprep.mubr.f32.mxu0 0.0
    %608 = vmatmul.mubr.f32.gmra.mrb[0].mxu0 %v444
    %v609 = vpop.f32.mrb[0].mxu0
    %v610 = vadd.f32 %v434, %v609
    %v611 = vpop.f32.mrb[0].mxu0
    %612 = vmatprep.mubr.f32.mxu0 0.0
    %613 = vmatmul.mubr.f32.gmra.mrb[0].mxu0 %v447
    %v614 = vpop.f32.mrb[0].mxu0
    %v615 = vadd.f32 %v434, %v614
    %v616 = vpop.f32.mrb[0].mxu0
    %617 = vmatprep.mubr.f32.mxu0 0.0
    %618 = vmatmul.mubr.f32.gmra.mrb[0].mxu0 %v450
    %v619 = vpop.f32.mrb[0].mxu0
    %v620 = vadd.f32 %v434, %v619
    %v621 = vpop.f32.mrb[0].mxu0
    %622 = vmatprep.mubr.f32.mxu0 0.0
    %623 = vmatmul.mubr.f32.gmra.mrb[0].mxu0 %v453
    %v624 = vpop.f32.mrb[0].mxu0
    %v625 = vadd.f32 %v434, %v624
    %v626 = vpop.f32.mrb[0].mxu0
    %627 = vmatprep.mubr.f32.mxu0 0.0
    %628 = vmatmul.mubr.f32.gmra.mrb[0].mxu0 %v456
    %v629 = vpop.f32.mrb[0].mxu0
    %v630 = vadd.f32 %v434, %v629
    %v631 = vpop.f32.mrb[0].mxu0
    %632 = vmatprep.mubr.f32.mxu0 0.0
    %633 = vmatmul.mubr.f32.gmra.mrb[0].mxu0 %v459
    %v634 = vpop.f32.mrb[0].mxu0
    %v635 = vadd.f32 %v434, %v634
    %v636 = vpop.f32.mrb[0].mxu0
    %637 = vmatprep.mubr.f32.mxu0 0.0
    %638 = vmatmul.mubr.f32.gmra.mrb[0].mxu0 %v462
    %v639 = vpop.f32.mrb[0].mxu0
    %v640 = vadd.f32 %v434, %v639
    %v641 = vpop.f32.mrb[0].mxu0
    %642 = vmatprep.mubr.f32.mxu0 0.0
    %643 = vmatmul.mubr.f32.gmra.mrb[0].mxu0 %v465
    %v644 = vpop.f32.mrb[0].mxu0
    %v645 = vadd.f32 %v434, %v644
    %v646 = vpop.f32.mrb[0].mxu0
    %647 = vmatprep.mubr.f32.mxu0 0.0
    %648 = vmatmul.mubr.f32.gmra.mrb[0].mxu0 %v468
    %v649 = vpop.f32.mrb[0].mxu0
    %v650 = vadd.f32 %v434, %v649
    %v651 = vpop.f32.mrb[0].mxu0
    %652 = vmatprep.mubr.f32.mxu0 0.0
    %653 = vmatmul.mubr.f32.gmra.mrb[0].mxu0 %v471
    %v654 = vpop.f32.mrb[0].mxu0
    %v655 = vadd.f32 %v434, %v654
    %v656 = vpop.f32.mrb[0].mxu0
    %657 = vmatprep.mubr.f32.mxu0 0.0
    %658 = vmatmul.mubr.f32.gmra.mrb[0].mxu0 %v474
    %v659 = vpop.f32.mrb[0].mxu0
    %v660 = vadd.f32 %v434, %v659
    %v661 = vpop.f32.mrb[0].mxu0
    %662 = vmatprep.mubr.f32.mxu0 0.0
    %663 = vmatmul.mubr.f32.gmra.mrb[0].mxu0 %v477
    %v664 = vpop.f32.mrb[0].mxu0
    %v665 = vadd.f32 %v434, %v664
    %v666 = vpop.f32.mrb[0].mxu0
    %667 = vmatprep.mubr.f32.mxu0 0.0
    %668 = vmatmul.mubr.f32.gmra.mrb[0].mxu0 %v480
    %v669 = vpop.f32.mrb[0].mxu0
    %v670 = vadd.f32 %v434, %v669
    %v671 = vpop.f32.mrb[0].mxu0
    %672 = vmatprep.mubr.f32.mxu0 0.0
    %673 = vmatmul.mubr.f32.gmra.mrb[0].mxu0 %v483
    %v674 = vpop.f32.mrb[0].mxu0
    %v675 = vadd.f32 %v434, %v674
    %v676 = vpop.f32.mrb[0].mxu0
    %677 = vmatprep.mubr.f32.mxu0 0.0
    %678 = vmatmul.mubr.f32.gmra.mrb[0].mxu0 %v486
    %v679 = vpop.f32.mrb[0].mxu0
    %v680 = vadd.f32 %v434, %v679
    %v681 = vpop.f32.mrb[0].mxu0
    %682 = vmatprep.mubr.f32.mxu0 0.0
    %683 = vmatmul.mubr.f32.gmra.mrb[0].mxu0 %v489
    %v684 = vpop.f32.mrb[0].mxu0
    %v685 = vadd.f32 %v434, %v684
    %v686 = vpop.f32.mrb[0].mxu0
    %687 = vmatprep.mubr.f32.mxu0 0.0
    %688 = vmatmul.mubr.f32.gmra.mrb[0].mxu0 %v492
    %v689 = vpop.f32.mrb[0].mxu0
    %v690 = vadd.f32 %v434, %v689
    %v691 = vpop.f32.mrb[0].mxu0
    %692 = vmatprep.mubr.f32.mxu0 0.0
    %693 = vmatmul.mubr.f32.gmra.mrb[0].mxu0 %v495
    %v694 = vpop.f32.mrb[0].mxu0
    %v695 = vadd.f32 %v434, %v694
    %v696 = vpop.f32.mrb[0].mxu0
    %697 = vmatprep.mubr.f32.mxu0 0.0
    %698 = vmatmul.mubr.f32.gmra.mrb[0].mxu0 %v498
    %v699 = vpop.f32.mrb[0].mxu0
    %v700 = vadd.f32 %v434, %v699
    %v701 = vpop.f32.mrb[0].mxu0
    %702 = vmatprep.mubr.f32.mxu0 0.0
    %703 = vmatmul.mubr.f32.gmra.mrb[0].mxu0 %v501
    %v704 = vpop.f32.mrb[0].mxu0
    %v705 = vadd.f32 %v434, %v704
    %v706 = vpop.f32.mrb[0].mxu0
    %707 = vmatprep.mubr.f32.mxu0 0.0
    %708 = vmatmul.mubr.f32.gmra.mrb[0].mxu0 %v504
    %v709 = vpop.f32.mrb[0].mxu0
    %v710 = vadd.f32 %v434, %v709
    %v711 = vpop.f32.mrb[0].mxu0
    %712 = vmatprep.mubr.f32.mxu0 0.0
    %713 = vmatmul.mubr.f32.gmra.mrb[0].mxu0 %v507
    %v714 = vpop.f32.mrb[0].mxu0
    %v715 = vadd.f32 %v434, %v714
    %v716 = vpop.f32.mrb[0].mxu0
    %717 = vmatprep.mubr.f32.mxu0 0.0
    %718 = vmatmul.mubr.f32.gmra.mrb[0].mxu0 %v510
    %v719 = vpop.f32.mrb[0].mxu0
    %v720 = vadd.f32 %v434, %v719
    %v721 = vpop.f32.mrb[0].mxu0
    %722 = vmatprep.mubr.f32.mxu0 0.0
    %723 = vmatmul.mubr.f32.gmra.mrb[0].mxu0 %v513
    %v724 = vpop.f32.mrb[0].mxu0
    %v725 = vadd.f32 %v434, %v724
    %v726 = vpop.f32.mrb[0].mxu0
    %727 = vmatprep.mubr.f32.mxu0 0.0
    %728 = vmatmul.mubr.f32.gmra.mrb[0].mxu0 %v516
    %v729 = vpop.f32.mrb[0].mxu0
    %v730 = vadd.f32 %v434, %v729
    %v731 = vpop.f32.mrb[0].mxu0
    %732 = vmatprep.mubr.f32.mxu0 0.0
    %733 = vmatmul.mubr.f32.gmra.mrb[0].mxu0 %v519
    %v734 = vpop.f32.mrb[0].mxu0
    %v735 = vadd.f32 %v434, %v734
    %v736 = vpop.f32.mrb[0].mxu0
    %737 = vmatprep.mubr.f32.mxu0 0.0
    %738 = vmatmul.mubr.f32.gmra.mrb[0].mxu0 %v522
    %v739 = vpop.f32.mrb[0].mxu0
    %v740 = vadd.f32 %v434, %v739
    %v741 = vpop.f32.mrb[0].mxu0
    %742 = vmatprep.mubr.f32.mxu0 0.0
    %743 = vmatmul.mubr.f32.gmra.mrb[0].mxu0 %v525
    %v744 = vpop.f32.mrb[0].mxu0
    %v745 = vadd.f32 %v434, %v744
    %v746 = vpop.f32.mrb[0].mxu0
    %747 = vmatprep.mubr.f32.mxu0 0.0
    %748 = vmatmul.mubr.f32.gmra.mrb[0].mxu0 %v528
    %v749 = vpop.f32.mrb[0].mxu0
    %v750 = vadd.f32 %v434, %v749
    %v751 = vpop.f32.mrb[0].mxu0
    %752 = vmatprep.mubr.f32.mxu0 0.0
    %753 = vmatmul.mubr.f32.gmra.mrb[0].mxu0 %v531
    %v754 = vpop.f32.mrb[0].mxu0
    %v755 = vadd.f32 %v434, %v754
    %v756 = vpop.f32.mrb[0].mxu0
    %757 = vdwg.mxu0
    %v758 = vmax.f32 %v600, 0.0
    %v759 = vmax.f32 %v605, 0.0
    %v760 = vmax.f32 %v610, 0.0
    %v761 = vmax.f32 %v615, 0.0
    %v762 = vmax.f32 %v620, 0.0
    %v763 = vmax.f32 %v625, 0.0
    %v764 = vmax.f32 %v630, 0.0
    %v765 = vmax.f32 %v635, 0.0
    %v766 = vmax.f32 %v640, 0.0
    %v767 = vmax.f32 %v645, 0.0
    %v768 = vmax.f32 %v650, 0.0
    %v769 = vmax.f32 %v655, 0.0
    %v770 = vmax.f32 %v660, 0.0
    %v771 = vmax.f32 %v665, 0.0
    %v772 = vmax.f32 %v670, 0.0
    %v773 = vmax.f32 %v675, 0.0
    %v774 = vmax.f32 %v680, 0.0
    %v775 = vmax.f32 %v685, 0.0
    %v776 = vmax.f32 %v690, 0.0
    %v777 = vmax.f32 %v695, 0.0
    %v778 = vmax.f32 %v700, 0.0
    %v779 = vmax.f32 %v705, 0.0
    %v780 = vmax.f32 %v710, 0.0
    %v781 = vmax.f32 %v715, 0.0
    %v782 = vmax.f32 %v720, 0.0
    %v783 = vmax.f32 %v725, 0.0
    %v784 = vmax.f32 %v730, 0.0
    %v785 = vmax.f32 %v735, 0.0
    %v786 = vmax.f32 %v740, 0.0
    %v787 = vmax.f32 %v745, 0.0
    %v788 = vmax.f32 %v750, 0.0
    %v789 = vmax.f32 %v755, 0.0
    %v790 = vpack.c.bf16 %v759, %v758
    %v791 = vpack.c.bf16 %v761, %v760
    %v792 = vpack.c.bf16 %v763, %v762
    %v793 = vpack.c.bf16 %v765, %v764
    %v794 = vpack.c.bf16 %v767, %v766
    %v795 = vpack.c.bf16 %v769, %v768
    %v796 = vpack.c.bf16 %v771, %v770
    %v797 = vpack.c.bf16 %v773, %v772
    %v798 = vpack.c.bf16 %v775, %v774
    %v799 = vpack.c.bf16 %v777, %v776
    %v800 = vpack.c.bf16 %v779, %v778
    %v801 = vpack.c.bf16 %v781, %v780
    %v802 = vpack.c.bf16 %v783, %v782
    %v803 = vpack.c.bf16 %v785, %v784
    %v804 = vpack.c.bf16 %v787, %v786
    %v805 = vpack.c.bf16 %v789, %v788
    %v822 = vunpack.c.l.b16 %v790
    %v823 = vunpack.c.h.b16 %v790
    %v824 = vunpack.c.l.b16 %v791
    %v825 = vunpack.c.h.b16 %v791
    %v826 = vunpack.c.l.b16 %v792
    %v827 = vunpack.c.h.b16 %v792
    %v828 = vunpack.c.l.b16 %v793
    %v829 = vunpack.c.h.b16 %v793
    %v830 = vunpack.c.l.b16 %v794
    %v831 = vunpack.c.h.b16 %v794
    %v832 = vunpack.c.l.b16 %v795
    %v833 = vunpack.c.h.b16 %v795
    %v834 = vunpack.c.l.b16 %v796
    %v835 = vunpack.c.h.b16 %v796
    %v836 = vunpack.c.l.b16 %v797
    %v837 = vunpack.c.h.b16 %v797
    %v838 = vunpack.c.l.b16 %v798
    %v839 = vunpack.c.h.b16 %v798
    %v840 = vunpack.c.l.b16 %v799
    %v841 = vunpack.c.h.b16 %v799
    %v842 = vunpack.c.l.b16 %v800
    %v843 = vunpack.c.h.b16 %v800
    %v844 = vunpack.c.l.b16 %v801
    %v845 = vunpack.c.h.b16 %v801
    %v846 = vunpack.c.l.b16 %v802
    %v847 = vunpack.c.h.b16 %v802
    %v848 = vunpack.c.l.b16 %v803
    %v849 = vunpack.c.h.b16 %v803
    %v850 = vunpack.c.l.b16 %v804
    %v851 = vunpack.c.h.b16 %v804
    %v852 = vunpack.c.l.b16 %v805
    %v853 = vunpack.c.h.b16 %v805
    %v854 = vpack.c.b16 %v822, %v822
    %v855 = vpack.c.b16 %v823, %v823
    %v856 = vpack.c.b16 %v824, %v824
    %v857 = vpack.c.b16 %v825, %v825
    %v858 = vpack.c.b16 %v826, %v826
    %v859 = vpack.c.b16 %v827, %v827
    %v860 = vpack.c.b16 %v828, %v828
    %v861 = vpack.c.b16 %v829, %v829
    %v862 = vpack.c.b16 %v830, %v830
    %v863 = vpack.c.b16 %v831, %v831
    %v864 = vpack.c.b16 %v832, %v832
    %v865 = vpack.c.b16 %v833, %v833
    %v866 = vpack.c.b16 %v834, %v834
    %v867 = vpack.c.b16 %v835, %v835
    %v868 = vpack.c.b16 %v836, %v836
    %v869 = vpack.c.b16 %v837, %v837
    %v870 = vpack.c.b16 %v838, %v838
    %v871 = vpack.c.b16 %v839, %v839
    %v872 = vpack.c.b16 %v840, %v840
    %v873 = vpack.c.b16 %v841, %v841
    %v874 = vpack.c.b16 %v842, %v842
    %v875 = vpack.c.b16 %v843, %v843
    %v876 = vpack.c.b16 %v844, %v844
    %v877 = vpack.c.b16 %v845, %v845
    %v878 = vpack.c.b16 %v846, %v846
    %v879 = vpack.c.b16 %v847, %v847
    %v880 = vpack.c.b16 %v848, %v848
    %v881 = vpack.c.b16 %v849, %v849
    %v882 = vpack.c.b16 %v850, %v850
    %v883 = vpack.c.b16 %v851, %v851
    %v884 = vpack.c.b16 %v852, %v852
    %v885 = vpack.c.b16 %v853, %v853
    %vm918 = vcmask 257024
    %919 = vst.msk [vmem:[%s5] sm:$0xf] %vm918, %v854
    %920 = vst.msk [vmem:[%s5 + $0x4] sm:$0xf] %vm918, %v855
    %921 = vst.msk [vmem:[%s5 + $0x8] sm:$0xf] %vm918, %v856
    %922 = vst.msk [vmem:[%s5 + $0xc] sm:$0xf] %vm918, %v857
    %923 = vst.msk [vmem:[%s5 + $0x10] sm:$0xf] %vm918, %v858
    %924 = vst.msk [vmem:[%s5 + $0x14] sm:$0xf] %vm918, %v859
    %925 = vst.msk [vmem:[%s5 + $0x18] sm:$0xf] %vm918, %v860
    %926 = vst.msk [vmem:[%s5 + $0x1c] sm:$0xf] %vm918, %v861
    %927 = vst.msk [vmem:[%s5 + $0x20] sm:$0xf] %vm918, %v862
    %928 = vst.msk [vmem:[%s5 + $0x24] sm:$0xf] %vm918, %v863
    %929 = vst.msk [vmem:[%s5 + $0x28] sm:$0xf] %vm918, %v864
    %930 = vst.msk [vmem:[%s5 + $0x2c] sm:$0xf] %vm918, %v865
    %931 = vst.msk [vmem:[%s5 + $0x30] sm:$0xf] %vm918, %v866
    %932 = vst.msk [vmem:[%s5 + $0x34] sm:$0xf] %vm918, %v867
    %933 = vst.msk [vmem:[%s5 + $0x38] sm:$0xf] %vm918, %v868
    %934 = vst.msk [vmem:[%s5 + $0x3c] sm:$0xf] %vm918, %v869
    %935 = vst.msk [vmem:[%s5 + $0x40] sm:$0xf] %vm918, %v870
    %936 = vst.msk [vmem:[%s5 + $0x44] sm:$0xf] %vm918, %v871
    %937 = vst.msk [vmem:[%s5 + $0x48] sm:$0xf] %vm918, %v872
    %938 = vst.msk [vmem:[%s5 + $0x4c] sm:$0xf] %vm918, %v873
    %939 = vst.msk [vmem:[%s5 + $0x50] sm:$0xf] %vm918, %v874
    %940 = vst.msk [vmem:[%s5 + $0x54] sm:$0xf] %vm918, %v875
    %941 = vst.msk [vmem:[%s5 + $0x58] sm:$0xf] %vm918, %v876
    %942 = vst.msk [vmem:[%s5 + $0x5c] sm:$0xf] %vm918, %v877
    %943 = vst.msk [vmem:[%s5 + $0x60] sm:$0xf] %vm918, %v878
    %944 = vst.msk [vmem:[%s5 + $0x64] sm:$0xf] %vm918, %v879
    %945 = vst.msk [vmem:[%s5 + $0x68] sm:$0xf] %vm918, %v880
    %946 = vst.msk [vmem:[%s5 + $0x6c] sm:$0xf] %vm918, %v881
    %947 = vst.msk [vmem:[%s5 + $0x70] sm:$0xf] %vm918, %v882
    %948 = vst.msk [vmem:[%s5 + $0x74] sm:$0xf] %vm918, %v883
    %949 = vst.msk [vmem:[%s5 + $0x78] sm:$0xf] %vm918, %v884
    %950 = vst.msk [vmem:[%s5 + $0x7c] sm:$0xf] %vm918, %v885
    %s951 = smul.u32 0, 256
    %v952 = vlaneseq
    %v953 = vshrl.u32 %v952, 7
    %v954 = vadd.s32 %v953, 8
    %v955 = vadd.s32 %v953, 16
    %v956 = vadd.s32 %v953, 24
    %v957 = vadd.s32 %v953, 32
    %v958 = vadd.s32 %v953, 40
    %v959 = vadd.s32 %v953, 48
    %v960 = vadd.s32 %v953, 56
    %v961 = vadd.s32 %v953, 64
    %v962 = vadd.s32 %v953, 72
    %v963 = vadd.s32 %v953, 80
    %v964 = vadd.s32 %v953, 88
    %v965 = vadd.s32 %v953, 96
    %v966 = vadd.s32 %v953, 104
    %v967 = vadd.s32 %v953, 112
    %v968 = vadd.s32 %v953, 120
    %v969 = vadd.s32 %v953, 128
    %v970 = vadd.s32 %v953, 136
    %v971 = vadd.s32 %v953, 144
    %v972 = vadd.s32 %v953, 152
    %v973 = vadd.s32 %v953, 160
    %v974 = vadd.s32 %v953, 168
    %v975 = vadd.s32 %v953, 176
    %v976 = vadd.s32 %v953, 184
    %v977 = vadd.s32 %v953, 192
    %v978 = vadd.s32 %v953, 200
    %v979 = vadd.s32 %v953, 208
    %v980 = vadd.s32 %v953, 216
    %v981 = vadd.s32 %v953, 224
    %v982 = vadd.s32 %v953, 232
    %v983 = vadd.s32 %v953, 240
    %v984 = vadd.s32 %v953, 248
    %v985 = vstv %s951
    %v986 = vadd.s32 %v985, %v953
    %v987 = vadd.s32 %v985, %v954
    %v988 = vadd.s32 %v985, %v955
    %v989 = vadd.s32 %v985, %v956
    %v990 = vadd.s32 %v985, %v957
    %v991 = vadd.s32 %v985, %v958
    %v992 = vadd.s32 %v985, %v959
    %v993 = vadd.s32 %v985, %v960
    %v994 = vadd.s32 %v985, %v961
    %v995 = vadd.s32 %v985, %v962
    %v996 = vadd.s32 %v985, %v963
    %v997 = vadd.s32 %v985, %v964
    %v998 = vadd.s32 %v985, %v965
    %v999 = vadd.s32 %v985, %v966
    %v1000 = vadd.s32 %v985, %v967
    %v1001 = vadd.s32 %v985, %v968
    %v1002 = vadd.s32 %v985, %v969
    %v1003 = vadd.s32 %v985, %v970
    %v1004 = vadd.s32 %v985, %v971
    %v1005 = vadd.s32 %v985, %v972
    %v1006 = vadd.s32 %v985, %v973
    %v1007 = vadd.s32 %v985, %v974
    %v1008 = vadd.s32 %v985, %v975
    %v1009 = vadd.s32 %v985, %v976
    %v1010 = vadd.s32 %v985, %v977
    %v1011 = vadd.s32 %v985, %v978
    %v1012 = vadd.s32 %v985, %v979
    %v1013 = vadd.s32 %v985, %v980
    %v1014 = vadd.s32 %v985, %v981
    %v1015 = vadd.s32 %v985, %v982
    %v1016 = vadd.s32 %v985, %v983
    %v1017 = vadd.s32 %v985, %v984
    %vm1018 = vcmp.lt.s32.totalorder %v986, 16
    %vm1019 = vcmp.lt.s32.totalorder %v987, 16
    %vm1020 = vcmp.lt.s32.totalorder %v988, 16
    %vm1021 = vcmp.lt.s32.totalorder %v989, 16
    %vm1022 = vcmp.lt.s32.totalorder %v990, 16
    %vm1023 = vcmp.lt.s32.totalorder %v991, 16
    %vm1024 = vcmp.lt.s32.totalorder %v992, 16
    %vm1025 = vcmp.lt.s32.totalorder %v993, 16
    %vm1026 = vcmp.lt.s32.totalorder %v994, 16
    %vm1027 = vcmp.lt.s32.totalorder %v995, 16
    %vm1028 = vcmp.lt.s32.totalorder %v996, 16
    %vm1029 = vcmp.lt.s32.totalorder %v997, 16
    %vm1030 = vcmp.lt.s32.totalorder %v998, 16
    %vm1031 = vcmp.lt.s32.totalorder %v999, 16
    %vm1032 = vcmp.lt.s32.totalorder %v1000, 16
    %vm1033 = vcmp.lt.s32.totalorder %v1001, 16
    %vm1034 = vcmp.lt.s32.totalorder %v1002, 16
    %vm1035 = vcmp.lt.s32.totalorder %v1003, 16
    %vm1036 = vcmp.lt.s32.totalorder %v1004, 16
    %vm1037 = vcmp.lt.s32.totalorder %v1005, 16
    %vm1038 = vcmp.lt.s32.totalorder %v1006, 16
    %vm1039 = vcmp.lt.s32.totalorder %v1007, 16
    %vm1040 = vcmp.lt.s32.totalorder %v1008, 16
    %vm1041 = vcmp.lt.s32.totalorder %v1009, 16
    %vm1042 = vcmp.lt.s32.totalorder %v1010, 16
    %vm1043 = vcmp.lt.s32.totalorder %v1011, 16
    %vm1044 = vcmp.lt.s32.totalorder %v1012, 16
    %vm1045 = vcmp.lt.s32.totalorder %v1013, 16
    %vm1046 = vcmp.lt.s32.totalorder %v1014, 16
    %vm1047 = vcmp.lt.s32.totalorder %v1015, 16
    %vm1048 = vcmp.lt.s32.totalorder %v1016, 16
    %vm1049 = vcmp.lt.s32.totalorder %v1017, 16
    %s1050 = ssub.s32 16, %s951
    %p1051 = scmp.gt.s32.totalorder %s1050, 1
    %s1052 = scalar_select %p1051, %s1050, 1
    %p1053 = scmp.lt.s32.totalorder %s1052, 256
    %s1054 = scalar_select %p1053, %s1052, 256
    %s1055 = scvt.s32.f32 %s1054
    %v1056 = vsel %vm1018, 1, 0
    %v1057 = vsel %vm1019, 1, 0
    %v1058 = vsel %vm1020, 1, 0
    %v1059 = vsel %vm1021, 1, 0
    %v1060 = vsel %vm1022, 1, 0
    %v1061 = vsel %vm1023, 1, 0
    %v1062 = vsel %vm1024, 1, 0
    %v1063 = vsel %vm1025, 1, 0
    %v1064 = vsel %vm1026, 1, 0
    %v1065 = vsel %vm1027, 1, 0
    %v1066 = vsel %vm1028, 1, 0
    %v1067 = vsel %vm1029, 1, 0
    %v1068 = vsel %vm1030, 1, 0
    %v1069 = vsel %vm1031, 1, 0
    %v1070 = vsel %vm1032, 1, 0
    %v1071 = vsel %vm1033, 1, 0
    %v1072 = vsel %vm1034, 1, 0
    %v1073 = vsel %vm1035, 1, 0
    %v1074 = vsel %vm1036, 1, 0
    %v1075 = vsel %vm1037, 1, 0
    %v1076 = vsel %vm1038, 1, 0
    %v1077 = vsel %vm1039, 1, 0
    %v1078 = vsel %vm1040, 1, 0
    %v1079 = vsel %vm1041, 1, 0
    %v1080 = vsel %vm1042, 1, 0
    %v1081 = vsel %vm1043, 1, 0
    %v1082 = vsel %vm1044, 1, 0
    %v1083 = vsel %vm1045, 1, 0
    %v1084 = vsel %vm1046, 1, 0
    %v1085 = vsel %vm1047, 1, 0
    %v1086 = vsel %vm1048, 1, 0
    %v1087 = vsel %vm1049, 1, 0
    %vm1088 = vcmp.eq.s32.totalorder %v1056, 1
    %vm1089 = vcmp.eq.s32.totalorder %v1057, 1
    %vm1090 = vcmp.eq.s32.totalorder %v1058, 1
    %vm1091 = vcmp.eq.s32.totalorder %v1059, 1
    %vm1092 = vcmp.eq.s32.totalorder %v1060, 1
    %vm1093 = vcmp.eq.s32.totalorder %v1061, 1
    %vm1094 = vcmp.eq.s32.totalorder %v1062, 1
    %vm1095 = vcmp.eq.s32.totalorder %v1063, 1
    %vm1096 = vcmp.eq.s32.totalorder %v1064, 1
    %vm1097 = vcmp.eq.s32.totalorder %v1065, 1
    %vm1098 = vcmp.eq.s32.totalorder %v1066, 1
    %vm1099 = vcmp.eq.s32.totalorder %v1067, 1
    %vm1100 = vcmp.eq.s32.totalorder %v1068, 1
    %vm1101 = vcmp.eq.s32.totalorder %v1069, 1
    %vm1102 = vcmp.eq.s32.totalorder %v1070, 1
    %vm1103 = vcmp.eq.s32.totalorder %v1071, 1
    %vm1104 = vcmp.eq.s32.totalorder %v1072, 1
    %vm1105 = vcmp.eq.s32.totalorder %v1073, 1
    %vm1106 = vcmp.eq.s32.totalorder %v1074, 1
    %vm1107 = vcmp.eq.s32.totalorder %v1075, 1
    %vm1108 = vcmp.eq.s32.totalorder %v1076, 1
    %vm1109 = vcmp.eq.s32.totalorder %v1077, 1
    %vm1110 = vcmp.eq.s32.totalorder %v1078, 1
    %vm1111 = vcmp.eq.s32.totalorder %v1079, 1
    %vm1112 = vcmp.eq.s32.totalorder %v1080, 1
    %vm1113 = vcmp.eq.s32.totalorder %v1081, 1
    %vm1114 = vcmp.eq.s32.totalorder %v1082, 1
    %vm1115 = vcmp.eq.s32.totalorder %v1083, 1
    %vm1116 = vcmp.eq.s32.totalorder %v1084, 1
    %vm1117 = vcmp.eq.s32.totalorder %v1085, 1
    %vm1118 = vcmp.eq.s32.totalorder %v1086, 1
    %vm1119 = vcmp.eq.s32.totalorder %v1087, 1
    %v1120 = vsel %vm1088, %v758, 0.0
    %v1121 = vsel %vm1089, %v759, 0.0
    %v1122 = vsel %vm1090, %v760, 0.0
    %v1123 = vsel %vm1091, %v761, 0.0
    %v1124 = vsel %vm1092, %v762, 0.0
    %v1125 = vsel %vm1093, %v763, 0.0
    %v1126 = vsel %vm1094, %v764, 0.0
    %v1127 = vsel %vm1095, %v765, 0.0
    %v1128 = vsel %vm1096, %v766, 0.0
    %v1129 = vsel %vm1097, %v767, 0.0
    %v1130 = vsel %vm1098, %v768, 0.0
    %v1131 = vsel %vm1099, %v769, 0.0
    %v1132 = vsel %vm1100, %v770, 0.0
    %v1133 = vsel %vm1101, %v771, 0.0
    %v1134 = vsel %vm1102, %v772, 0.0
    %v1135 = vsel %vm1103, %v773, 0.0
    %v1136 = vsel %vm1104, %v774, 0.0
    %v1137 = vsel %vm1105, %v775, 0.0
    %v1138 = vsel %vm1106, %v776, 0.0
    %v1139 = vsel %vm1107, %v777, 0.0
    %v1140 = vsel %vm1108, %v778, 0.0
    %v1141 = vsel %vm1109, %v779, 0.0
    %v1142 = vsel %vm1110, %v780, 0.0
    %v1143 = vsel %vm1111, %v781, 0.0
    %v1144 = vsel %vm1112, %v782, 0.0
    %v1145 = vsel %vm1113, %v783, 0.0
    %v1146 = vsel %vm1114, %v784, 0.0
    %v1147 = vsel %vm1115, %v785, 0.0
    %v1148 = vsel %vm1116, %v786, 0.0
    %v1149 = vsel %vm1117, %v787, 0.0
    %v1150 = vsel %vm1118, %v788, 0.0
    %v1151 = vsel %vm1119, %v789, 0.0
    %v1152 = vsel %vm436, %v1120, 0.0
    %v1153 = vsel %vm436, %v1121, 0.0
    %v1154 = vadd.f32 %v1152, %v1153
    %v1155 = vsel %vm436, %v1122, 0.0
    %v1156 = vadd.f32 %v1154, %v1155
    %v1157 = vsel %vm436, %v1123, 0.0
    %v1158 = vadd.f32 %v1156, %v1157
    %v1159 = vsel %vm436, %v1124, 0.0
    %v1160 = vadd.f32 %v1158, %v1159
    %v1161 = vsel %vm436, %v1125, 0.0
    %v1162 = vadd.f32 %v1160, %v1161
    %v1163 = vsel %vm436, %v1126, 0.0
    %v1164 = vadd.f32 %v1162, %v1163
    %v1165 = vsel %vm436, %v1127, 0.0
    %v1166 = vadd.f32 %v1164, %v1165
    %v1167 = vsel %vm436, %v1128, 0.0
    %v1168 = vadd.f32 %v1166, %v1167
    %v1169 = vsel %vm436, %v1129, 0.0
    %v1170 = vadd.f32 %v1168, %v1169
    %v1171 = vsel %vm436, %v1130, 0.0
    %v1172 = vadd.f32 %v1170, %v1171
    %v1173 = vsel %vm436, %v1131, 0.0
    %v1174 = vadd.f32 %v1172, %v1173
    %v1175 = vsel %vm436, %v1132, 0.0
    %v1176 = vadd.f32 %v1174, %v1175
    %v1177 = vsel %vm436, %v1133, 0.0
    %v1178 = vadd.f32 %v1176, %v1177
    %v1179 = vsel %vm436, %v1134, 0.0
    %v1180 = vadd.f32 %v1178, %v1179
    %v1181 = vsel %vm436, %v1135, 0.0
    %v1182 = vadd.f32 %v1180, %v1181
    %v1183 = vsel %vm436, %v1136, 0.0
    %v1184 = vadd.f32 %v1182, %v1183
    %v1185 = vsel %vm436, %v1137, 0.0
    %v1186 = vadd.f32 %v1184, %v1185
    %v1187 = vsel %vm436, %v1138, 0.0
    %v1188 = vadd.f32 %v1186, %v1187
    %v1189 = vsel %vm436, %v1139, 0.0
    %v1190 = vadd.f32 %v1188, %v1189
    %v1191 = vsel %vm436, %v1140, 0.0
    %v1192 = vadd.f32 %v1190, %v1191
    %v1193 = vsel %vm436, %v1141, 0.0
    %v1194 = vadd.f32 %v1192, %v1193
    %v1195 = vsel %vm436, %v1142, 0.0
    %v1196 = vadd.f32 %v1194, %v1195
    %v1197 = vsel %vm436, %v1143, 0.0
    %v1198 = vadd.f32 %v1196, %v1197
    %v1199 = vsel %vm436, %v1144, 0.0
    %v1200 = vadd.f32 %v1198, %v1199
    %v1201 = vsel %vm436, %v1145, 0.0
    %v1202 = vadd.f32 %v1200, %v1201
    %v1203 = vsel %vm436, %v1146, 0.0
    %v1204 = vadd.f32 %v1202, %v1203
    %v1205 = vsel %vm436, %v1147, 0.0
    %v1206 = vadd.f32 %v1204, %v1205
    %v1207 = vsel %vm436, %v1148, 0.0
    %v1208 = vadd.f32 %v1206, %v1207
    %v1209 = vsel %vm436, %v1149, 0.0
    %v1210 = vadd.f32 %v1208, %v1209
    %v1211 = vsel %vm436, %v1150, 0.0
    %v1212 = vadd.f32 %v1210, %v1211
    %v1213 = vsel %vm436, %v1151, 0.0
    %v1214 = vadd.f32 %v1212, %v1213
    %v1215 = vrot.slane %v1214, 4
    %v1216 = vadd.f32 %v1214, %v1215
    %v1217 = vrot.slane %v1216, 2
    %v1218 = vadd.f32 %v1216, %v1217
    %v1219 = vrot.slane %v1218, 1
    %v1220 = vadd.f32 %v1218, %v1219
    %v1221 = vstv %s1055
    %v1222 = vrcp.pop %v1221
    %v1223 = vmul.f32 %v1220, %v1222
    %v1224 = vsub.f32 %v758, %v1223
    %v1225 = vsub.f32 %v759, %v1223
    %v1226 = vsub.f32 %v760, %v1223
    %v1227 = vsub.f32 %v761, %v1223
    %v1228 = vsub.f32 %v762, %v1223
    %v1229 = vsub.f32 %v763, %v1223
    %v1230 = vsub.f32 %v764, %v1223
    %v1231 = vsub.f32 %v765, %v1223
    %v1232 = vsub.f32 %v766, %v1223
    %v1233 = vsub.f32 %v767, %v1223
    %v1234 = vsub.f32 %v768, %v1223
    %v1235 = vsub.f32 %v769, %v1223
    %v1236 = vsub.f32 %v770, %v1223
    %v1237 = vsub.f32 %v771, %v1223
    %v1238 = vsub.f32 %v772, %v1223
    %v1239 = vsub.f32 %v773, %v1223
    %v1240 = vsub.f32 %v774, %v1223
    %v1241 = vsub.f32 %v775, %v1223
    %v1242 = vsub.f32 %v776, %v1223
    %v1243 = vsub.f32 %v777, %v1223
    %v1244 = vsub.f32 %v778, %v1223
    %v1245 = vsub.f32 %v779, %v1223
    %v1246 = vsub.f32 %v780, %v1223
    %v1247 = vsub.f32 %v781, %v1223
    %v1248 = vsub.f32 %v782, %v1223
    %v1249 = vsub.f32 %v783, %v1223
    %v1250 = vsub.f32 %v784, %v1223
    %v1251 = vsub.f32 %v785, %v1223
    %v1252 = vsub.f32 %v786, %v1223
    %v1253 = vsub.f32 %v787, %v1223
    %v1254 = vsub.f32 %v788, %v1223
    %v1255 = vsub.f32 %v789, %v1223
    %v1256 = vsel %vm1088, %v1224, 0.0
    %v1257 = vsel %vm1089, %v1225, 0.0
    %v1258 = vsel %vm1090, %v1226, 0.0
    %v1259 = vsel %vm1091, %v1227, 0.0
    %v1260 = vsel %vm1092, %v1228, 0.0
    %v1261 = vsel %vm1093, %v1229, 0.0
    %v1262 = vsel %vm1094, %v1230, 0.0
    %v1263 = vsel %vm1095, %v1231, 0.0
    %v1264 = vsel %vm1096, %v1232, 0.0
    %v1265 = vsel %vm1097, %v1233, 0.0
    %v1266 = vsel %vm1098, %v1234, 0.0
    %v1267 = vsel %vm1099, %v1235, 0.0
    %v1268 = vsel %vm1100, %v1236, 0.0
    %v1269 = vsel %vm1101, %v1237, 0.0
    %v1270 = vsel %vm1102, %v1238, 0.0
    %v1271 = vsel %vm1103, %v1239, 0.0
    %v1272 = vsel %vm1104, %v1240, 0.0
    %v1273 = vsel %vm1105, %v1241, 0.0
    %v1274 = vsel %vm1106, %v1242, 0.0
    %v1275 = vsel %vm1107, %v1243, 0.0
    %v1276 = vsel %vm1108, %v1244, 0.0
    %v1277 = vsel %vm1109, %v1245, 0.0
    %v1278 = vsel %vm1110, %v1246, 0.0
    %v1279 = vsel %vm1111, %v1247, 0.0
    %v1280 = vsel %vm1112, %v1248, 0.0
    %v1281 = vsel %vm1113, %v1249, 0.0
    %v1282 = vsel %vm1114, %v1250, 0.0
    %v1283 = vsel %vm1115, %v1251, 0.0
    %v1284 = vsel %vm1116, %v1252, 0.0
    %v1285 = vsel %vm1117, %v1253, 0.0
    %v1286 = vsel %vm1118, %v1254, 0.0
    %v1287 = vsel %vm1119, %v1255, 0.0
    %v1288 = vmul.f32 %v1256, %v1256
    %v1289 = vmul.f32 %v1257, %v1257
    %v1290 = vmul.f32 %v1258, %v1258
    %v1291 = vmul.f32 %v1259, %v1259
    %v1292 = vmul.f32 %v1260, %v1260
    %v1293 = vmul.f32 %v1261, %v1261
    %v1294 = vmul.f32 %v1262, %v1262
    %v1295 = vmul.f32 %v1263, %v1263
    %v1296 = vmul.f32 %v1264, %v1264
    %v1297 = vmul.f32 %v1265, %v1265
    %v1298 = vmul.f32 %v1266, %v1266
    %v1299 = vmul.f32 %v1267, %v1267
    %v1300 = vmul.f32 %v1268, %v1268
    %v1301 = vmul.f32 %v1269, %v1269
    %v1302 = vmul.f32 %v1270, %v1270
    %v1303 = vmul.f32 %v1271, %v1271
    %v1304 = vmul.f32 %v1272, %v1272
    %v1305 = vmul.f32 %v1273, %v1273
    %v1306 = vmul.f32 %v1274, %v1274
    %v1307 = vmul.f32 %v1275, %v1275
    %v1308 = vmul.f32 %v1276, %v1276
    %v1309 = vmul.f32 %v1277, %v1277
    %v1310 = vmul.f32 %v1278, %v1278
    %v1311 = vmul.f32 %v1279, %v1279
    %v1312 = vmul.f32 %v1280, %v1280
    %v1313 = vmul.f32 %v1281, %v1281
    %v1314 = vmul.f32 %v1282, %v1282
    %v1315 = vmul.f32 %v1283, %v1283
    %v1316 = vmul.f32 %v1284, %v1284
    %v1317 = vmul.f32 %v1285, %v1285
    %v1318 = vmul.f32 %v1286, %v1286
    %v1319 = vmul.f32 %v1287, %v1287
    %v1320 = vsel %vm436, %v1288, 0.0
    %v1321 = vsel %vm436, %v1289, 0.0
    %v1322 = vadd.f32 %v1320, %v1321
    %v1323 = vsel %vm436, %v1290, 0.0
    %v1324 = vadd.f32 %v1322, %v1323
    %v1325 = vsel %vm436, %v1291, 0.0
    %v1326 = vadd.f32 %v1324, %v1325
    %v1327 = vsel %vm436, %v1292, 0.0
    %v1328 = vadd.f32 %v1326, %v1327
    %v1329 = vsel %vm436, %v1293, 0.0
    %v1330 = vadd.f32 %v1328, %v1329
    %v1331 = vsel %vm436, %v1294, 0.0
    %v1332 = vadd.f32 %v1330, %v1331
    %v1333 = vsel %vm436, %v1295, 0.0
    %v1334 = vadd.f32 %v1332, %v1333
    %v1335 = vsel %vm436, %v1296, 0.0
    %v1336 = vadd.f32 %v1334, %v1335
    %v1337 = vsel %vm436, %v1297, 0.0
    %v1338 = vadd.f32 %v1336, %v1337
    %v1339 = vsel %vm436, %v1298, 0.0
    %v1340 = vadd.f32 %v1338, %v1339
    %v1341 = vsel %vm436, %v1299, 0.0
    %v1342 = vadd.f32 %v1340, %v1341
    %v1343 = vsel %vm436, %v1300, 0.0
    %v1344 = vadd.f32 %v1342, %v1343
    %v1345 = vsel %vm436, %v1301, 0.0
    %v1346 = vadd.f32 %v1344, %v1345
    %v1347 = vsel %vm436, %v1302, 0.0
    %v1348 = vadd.f32 %v1346, %v1347
    %v1349 = vsel %vm436, %v1303, 0.0
    %v1350 = vadd.f32 %v1348, %v1349
    %v1351 = vsel %vm436, %v1304, 0.0
    %v1352 = vadd.f32 %v1350, %v1351
    %v1353 = vsel %vm436, %v1305, 0.0
    %v1354 = vadd.f32 %v1352, %v1353
    %v1355 = vsel %vm436, %v1306, 0.0
    %v1356 = vadd.f32 %v1354, %v1355
    %v1357 = vsel %vm436, %v1307, 0.0
    %v1358 = vadd.f32 %v1356, %v1357
    %v1359 = vsel %vm436, %v1308, 0.0
    %v1360 = vadd.f32 %v1358, %v1359
    %v1361 = vsel %vm436, %v1309, 0.0
    %v1362 = vadd.f32 %v1360, %v1361
    %v1363 = vsel %vm436, %v1310, 0.0
    %v1364 = vadd.f32 %v1362, %v1363
    %v1365 = vsel %vm436, %v1311, 0.0
    %v1366 = vadd.f32 %v1364, %v1365
    %v1367 = vsel %vm436, %v1312, 0.0
    %v1368 = vadd.f32 %v1366, %v1367
    %v1369 = vsel %vm436, %v1313, 0.0
    %v1370 = vadd.f32 %v1368, %v1369
    %v1371 = vsel %vm436, %v1314, 0.0
    %v1372 = vadd.f32 %v1370, %v1371
    %v1373 = vsel %vm436, %v1315, 0.0
    %v1374 = vadd.f32 %v1372, %v1373
    %v1375 = vsel %vm436, %v1316, 0.0
    %v1376 = vadd.f32 %v1374, %v1375
    %v1377 = vsel %vm436, %v1317, 0.0
    %v1378 = vadd.f32 %v1376, %v1377
    %v1379 = vsel %vm436, %v1318, 0.0
    %v1380 = vadd.f32 %v1378, %v1379
    %v1381 = vsel %vm436, %v1319, 0.0
    %v1382 = vadd.f32 %v1380, %v1381
    %v1383 = vrot.slane %v1382, 4
    %v1384 = vadd.f32 %v1382, %v1383
    %v1385 = vrot.slane %v1384, 2
    %v1386 = vadd.f32 %v1384, %v1385
    %v1387 = vrot.slane %v1386, 1
    %v1388 = vadd.f32 %v1386, %v1387
    %vm1389 = vcmask 253952
    %1390 = vst.msk [vmem:[#allocation2] sm:$0x1] %vm1389, %v1223
    %1391 = vst.msk [vmem:[#allocation2 + $0x1] sm:$0x1] %vm1389, %v1388
    // Predicated region
    $region22: #{tpu_custom_call.1} parent=1 // pred_check
      _
    $region23: #{tpu_custom_call.1} parent=1 // pred_check_branch
      %1393 = sbr.rel (0) target = $region25
    $region24: #{tpu_custom_call.1} parent=1 // pred_region
      _
    $region25: #{tpu_custom_call.1} parent=1 // pred_fallthru
      _
    // Predicated region
    $region26: #{tpu_custom_call.1} parent=1 // pred_check
      _
    $region27: #{tpu_custom_call.1} parent=1 // pred_check_branch
      %1395 = sbr.rel (0) target = $region29
    $region28: #{tpu_custom_call.1} parent=1 // pred_region
      %s1397 = ssub.s32 32, 32
      %1398 = vsyncadd [#allocation3], %s1397
      %s1400 = sshll.u32 [#allocation2], 4
      %s1401 = int_to_ptr.vmem [resolvable:$true] %s1400
      %1403 = dma.vmem_to_hbm [thread:$0]  %s1401, 32, %s6, [#allocation3]
    $region29: #{tpu_custom_call.1} parent=1 // pred_fallthru
      _
    // Predicated region
    $region30: #{tpu_custom_call.1} parent=1 // pred_check
      _
    $region31: #{tpu_custom_call.1} parent=1 // pred_check_branch
      %1405 = sbr.rel (0) target = $region33
    $region32: #{tpu_custom_call.1} parent=1 // pred_region
      _
    $region33: #{tpu_custom_call.1} parent=1 // pred_fallthru
      _
    // Predicated region
    $region34: #{tpu_custom_call.1} parent=1 // pred_check
      _
    $region35: #{tpu_custom_call.1} parent=1 // pred_check_branch
      %1407 = sbr.rel (0) target = $region37
    $region36: #{tpu_custom_call.1} parent=1 // pred_region
      %1408 = dma.done [#allocation3], 32
    $region37: #{tpu_custom_call.1} parent=1 // pred_fallthru
      _
    %1409 = vsyncpa [#allocation3], 1

</llo_original>
